<compile_context>
chip_gen: v7x
topology: tpu7x:2x2x1
jax: 0.10.0
libtpu: 0.0.40
codegen_flags: <defaults>
</compile_context>

<pallas_src>
import math

import jax
import jax.numpy as jnp
from jax import lax
from jax.experimental import pallas as pl
from jax.experimental.pallas import tpu as pltpu

N_HEADS = 8
MASK_FILL = -10000000000.0  # torch: masked_fill(mask, -1e10)
NORM_EPS = 1e-08


def mha_kernel(en_ref, de_ref, bias_ref, w_in_ref, wo_ref, b_ref, gb_ref, out_ref):
    """One batch element per grid step; dense lane-wide projections."""
    Ld = de_ref.shape[1]
    Le = en_ref.shape[1]
    H = de_ref.shape[-1]            # d_model (= d_k used by torch's scale)
    Hp = wo_ref.shape[0]            # projection width = 8 * dh
    dh = Hp // N_HEADS

    de = de_ref[0]                  # (Ld, H)  f32
    en = en_ref[0]                  # (Le, H)  f32
    bias = bias_ref[0]              # (Ld, Le) f32 additive mask (0 / -1e10)

    de_bf = de.astype(jnp.bfloat16)
    en_bf = en.astype(jnp.bfloat16)

    # Lane-dense projections: q (Ld, Hp), kv (Le, 2*Hp).  1/sqrt(d_k) is folded
    # into the q weights / bias in the wrapper.
    q_dense = jnp.dot(de_bf, w_in_ref[:, :Hp],
                      preferred_element_type=jnp.float32) + b_ref[:, :Hp]
    kv_dense = jnp.dot(en_bf, w_in_ref[:, Hp:],
                       preferred_element_type=jnp.float32) + b_ref[:, Hp:3 * Hp]

    # Per-head views only for the score / context matmuls.
    qh = jnp.stack([q_dense[:, h * dh:(h + 1) * dh] for h in range(N_HEADS)],
                   axis=0).astype(jnp.bfloat16)                       # (8, Ld, dh)
    kh = jnp.stack([kv_dense[:, h * dh:(h + 1) * dh] for h in range(N_HEADS)],
                   axis=0).astype(jnp.bfloat16)                       # (8, Le, dh)
    vh = jnp.stack([kv_dense[:, Hp + h * dh:Hp + (h + 1) * dh]
                    for h in range(N_HEADS)],
                   axis=0).astype(jnp.bfloat16)                       # (8, Le, dh)

    # Scores + additive mask + exact softmax (all f32).
    s = jnp.einsum('hqd,hkd->hqk', qh, kh,
                   preferred_element_type=jnp.float32) + bias[None]   # (8, Ld, Le)
    s_max = jnp.max(s, axis=-1, keepdims=True)
    p = jnp.exp(s - s_max)
    alpha = p / jnp.sum(p, axis=-1, keepdims=True)

    ctx = jnp.einsum('hqk,hkd->hqd', alpha.astype(jnp.bfloat16), vh,
                     preferred_element_type=jnp.float32)              # (8, Ld, dh)

    # Head concat (lane-dense (Ld, Hp)) + fused output projection (K=Hp, N=H).
    ctx_flat = jnp.concatenate([ctx[h] for h in range(N_HEADS)],
                               axis=-1).astype(jnp.bfloat16)          # (Ld, Hp)
    res = jnp.dot(ctx_flat, wo_ref[...],
                  preferred_element_type=jnp.float32) + b_ref[:, 3 * Hp:]

    x = res + de                                                      # residual

    # Norm: mean over features, UNBIASED variance (torch.var default), eps=1e-8.
    mu = jnp.mean(x, axis=-1, keepdims=True)
    var = jnp.sum((x - mu) ** 2, axis=-1, keepdims=True) / (H - 1)
    xn = (x - mu) * lax.rsqrt(var + NORM_EPS)

    # gamma / beta are scalars (as in the torch module's Norm) -> SMEM reads.
    out_ref[0] = gb_ref[0] * xn + gb_ref[1]


def multi_head_attention(en, de, mask_bool, params):
    """JAX wrapper: packs head-blocked weights, folds the score scale, launches the kernel."""
    (wq, bq, wk, bk, wv, bv, wo, bo, gamma, beta) = params
    B, Ld, H = de.shape
    Le = en.shape[1]
    Hp = wq.shape[0]                      # hidden_dim_
    dh = Hp // N_HEADS
    scale = 1.0 / math.sqrt(H)            # torch divides by sqrt(d_k), d_k = de.shape[-1]

    # torch: view(..., -1, 8) -> head h, feature i comes from projection row i*8 + h.
    # Head-blocked dense layout: column (h*dh + i) of the blocked weight is row
    # (i*8 + h) of the torch nn.Linear weight.
    def blocked(w):                       # (Hp, H) -> (H, Hp)
        return jnp.transpose(w.reshape(dh, N_HEADS, H), (2, 1, 0)).reshape(H, Hp)

    def blocked_bias(b):                  # (Hp,) -> (Hp,)
        return jnp.transpose(b.reshape(dh, N_HEADS)).reshape(Hp)

    # Packed operands: one weight matrix, one bias row, one output-proj matrix.
    w_in = jnp.concatenate(
        [blocked(wq) * scale, blocked(wk), blocked(wv)], axis=1
    ).astype(jnp.bfloat16)                                            # (H, 3*Hp)
    b_all = jnp.concatenate(
        [blocked_bias(bq) * scale, blocked_bias(bk), blocked_bias(bv),
         bo.astype(jnp.float32)]
    ).reshape(1, 3 * Hp + H).astype(jnp.float32)                      # (1, 3*Hp+H)
    wo_d = jnp.transpose(wo).astype(jnp.bfloat16)                     # (Hp, H)

    gb = jnp.array([gamma, beta], dtype=jnp.float32)

    # Additive mask bias (True == masked). Accepts (Ld, Le) or per-batch (B, Ld, Le).
    if mask_bool.ndim == 2:
        mask_bool = mask_bool[None]
    per_batch = mask_bool.shape[0] > 1
    bias = jnp.where(mask_bool, jnp.float32(MASK_FILL), jnp.float32(0.0))
    bias_index = (lambda b: (b, 0, 0)) if per_batch else (lambda b: (0, 0, 0))

    const2 = lambda b: (0, 0)

    grid_spec = pltpu.PrefetchScalarGridSpec(
        num_scalar_prefetch=0,
        grid=(B,),
        in_specs=[
            pl.BlockSpec((1, Le, H), lambda b: (b, 0, 0)),             # en
            pl.BlockSpec((1, Ld, H), lambda b: (b, 0, 0)),             # de
            pl.BlockSpec((1, Ld, Le), bias_index),                     # mask bias
            pl.BlockSpec((H, 3 * Hp), const2),                         # [Wq*s | Wk | Wv] bf16
            pl.BlockSpec((Hp, H), const2),                             # Wo bf16
            pl.BlockSpec((1, 3 * Hp + H), const2),                     # [bq*s | bk | bv | bo]
            pl.BlockSpec(memory_space=pltpu.MemorySpace.SMEM),         # [gamma, beta]
        ],
        out_specs=pl.BlockSpec((1, Ld, H), lambda b: (b, 0, 0)),
    )

    return pl.pallas_call(
        mha_kernel,
        out_shape=jax.ShapeDtypeStruct((B, Ld, H), jnp.float32),
        grid_spec=grid_spec,
        compiler_params=pltpu.CompilerParams(dimension_semantics=("parallel",)),
    )(en, de, bias, w_in, wo_d, b_all, gb)


def reference_forward(en, de, mask_bool, params):
    """Pure-JAX f32 transcription of the PyTorch forward (for validation)."""
    (wq, bq, wk, bk, wv, bv, wo, bo, gamma, beta) = params
    B, Ld, H = de.shape
    Le = en.shape[1]
    Hp = wq.shape[0]
    dh = Hp // N_HEADS

    q = de @ wq.T + bq                                            # (B, Ld, Hp)
    k = en @ wk.T + bk
    v = en @ wv.T + bv
    q = q.reshape(B, Ld, dh, N_HEADS).transpose(3, 0, 1, 2)       # (8, B, Ld, dh)
    k = k.reshape(B, Le, dh, N_HEADS).transpose(3, 0, 2, 1)       # (8, B, dh, Le)
    v = v.reshape(B, Le, dh, N_HEADS).transpose(3, 0, 1, 2)       # (8, B, Le, dh)

    e = jnp.einsum('hbqd,hbdk->hbqk', q, k) / math.sqrt(H)
    e = jnp.where(mask_bool, MASK_FILL, e)                        # broadcasts over (8, B)
    alpha = jax.nn.softmax(e, axis=-1)
    head3 = jnp.einsum('hbqk,hbkd->hbqd', alpha, v)
    a = jnp.concatenate([head3[h] for h in range(N_HEADS)], axis=2)   # (B, Ld, Hp)
    res = a @ wo.T + bo
    x = res + de
    mu = jnp.mean(x, axis=2, keepdims=True)
    var = jnp.sum((x - mu) ** 2, axis=2, keepdims=True) / (H - 1)     # torch.var (unbiased)
    return gamma * (x - mu) / jnp.sqrt(var + NORM_EPS) + beta


if __name__ == "__main__":
    # Small shapes consistent with the module (global hidden_dim = 128, 8 heads).
    B, Le, Ld, H, H_ = 2, 8, 8, 128, 256

    key = jax.random.PRNGKey(0)
    keys = jax.random.split(key, 10)

    std_qkv = math.sqrt(2.0 / H)
    wq = jax.random.normal(keys[0], (H_, H), jnp.float32) * std_qkv
    wk = jax.random.normal(keys[1], (H_, H), jnp.float32) * std_qkv
    wv = jax.random.normal(keys[2], (H_, H), jnp.float32) * std_qkv
    wo = jax.random.normal(keys[3], (H, H_), jnp.float32) * math.sqrt(2.0 / (H + H_))  # xavier normal
    b_in = 1.0 / math.sqrt(H)
    b_out = 1.0 / math.sqrt(H_)
    bq = jax.random.uniform(keys[4], (H_,), jnp.float32, -b_in, b_in)
    bk = jax.random.uniform(keys[5], (H_,), jnp.float32, -b_in, b_in)
    bv = jax.random.uniform(keys[6], (H_,), jnp.float32, -b_in, b_in)
    bo = jax.random.uniform(keys[7], (H,), jnp.float32, -b_out, b_out)
    gamma, beta = 1.0, 0.0  # Norm parameters as initialized in __init__

    params = (wq, bq, wk, bk, wv, bv, wo, bo, gamma, beta)

    en = jax.random.normal(keys[8], (B, Le, H), jnp.float32)
    de = jax.random.normal(keys[9], (B, Ld, H), jnp.float32)
    # causal boolean mask (True == masked out); shared across the batch.
    mask_bool = jnp.arange(Le)[None, :] > jnp.arange(Ld)[:, None]      # (Ld, Le)

    out = jax.block_until_ready(multi_head_attention(en, de, mask_bool, params))
    ref = jax.block_until_ready(reference_forward(en, de, mask_bool, params))

    assert out.shape == (B, Ld, H)
    err = float(jnp.max(jnp.abs(out - ref)))
    # bf16 matmul operands (f32 accumulation) -> relaxed tolerance.
    assert jnp.allclose(out, ref, atol=5e-2, rtol=5e-2), f"max abs err {err}"

    print("KERNEL_OK")
</pallas_src>

<mosaic_0001>
module attributes {stable_mosaic.version = 11 : i64} {
  func.func @mha_kernel(%arg0: i32, %arg1: memref<1x8x128xf32, #tpu.memory_space<vmem>>, %arg2: memref<1x8x128xf32, #tpu.memory_space<vmem>>, %arg3: memref<1x8x8xf32, #tpu.memory_space<vmem>>, %arg4: memref<128x768xbf16, #tpu.memory_space<vmem>>, %arg5: memref<256x128xbf16, #tpu.memory_space<vmem>>, %arg6: memref<1x896xf32, #tpu.memory_space<vmem>>, %arg7: memref<2xf32, #tpu.memory_space<smem>>, %arg8: memref<1x8x128xf32, #tpu.memory_space<vmem>>) attributes {dimension_semantics = [#tpu.dimension_semantics<parallel>], iteration_bounds = array<i64: 2>, scalar_prefetch = 0 : i64, scratch_operands = 0 : i64, tpu.core_type = #tpu.core_type<tc>, window_params = [{transform_indices = @transform_0, window_bounds = array<i64: 1, 8, 128>}, {transform_indices = @transform_1, window_bounds = array<i64: 1, 8, 128>}, {pipeline_mode = #tpu.pipeline_mode<synchronous>, transform_indices = @transform_2, window_bounds = array<i64: 1, 8, 8>}, {pipeline_mode = #tpu.pipeline_mode<synchronous>, transform_indices = @transform_3, window_bounds = array<i64: 128, 768>}, {pipeline_mode = #tpu.pipeline_mode<synchronous>, transform_indices = @transform_4, window_bounds = array<i64: 256, 128>}, {pipeline_mode = #tpu.pipeline_mode<synchronous>, transform_indices = @transform_5, window_bounds = array<i64: 1, 896>}, {transform_indices = @transform_6, window_bounds = array<i64: 2>}, {transform_indices = @transform_7, window_bounds = array<i64: 1, 8, 128>}]} {
    %c0 = arith.constant 0 : index
    %c0_0 = arith.constant 0 : index
    %c0_1 = arith.constant 0 : index
    %0 = vector.load %arg2[%c0, %c0_0, %c0_1] : memref<1x8x128xf32, #tpu.memory_space<vmem>>, vector<1x8x128xf32>
    %1 = vector.shape_cast %0 : vector<1x8x128xf32> to vector<8x128xf32>
    %c0_2 = arith.constant 0 : index
    %c0_3 = arith.constant 0 : index
    %c0_4 = arith.constant 0 : index
    %2 = vector.load %arg1[%c0_2, %c0_3, %c0_4] : memref<1x8x128xf32, #tpu.memory_space<vmem>>, vector<1x8x128xf32>
    %3 = vector.shape_cast %2 : vector<1x8x128xf32> to vector<8x128xf32>
    %c0_5 = arith.constant 0 : index
    %c0_6 = arith.constant 0 : index
    %c0_7 = arith.constant 0 : index
    %4 = vector.load %arg3[%c0_5, %c0_6, %c0_7] : memref<1x8x8xf32, #tpu.memory_space<vmem>>, vector<1x8x8xf32>
    %5 = vector.shape_cast %4 : vector<1x8x8xf32> to vector<8x8xf32>
    %6 = arith.truncf %1 : vector<8x128xf32> to vector<8x128xbf16>
    %7 = arith.truncf %3 : vector<8x128xf32> to vector<8x128xbf16>
    %c0_8 = arith.constant 0 : index
    %c0_9 = arith.constant 0 : index
    %8 = vector.load %arg4[%c0_8, %c0_9] : memref<128x768xbf16, #tpu.memory_space<vmem>>, vector<128x256xbf16>
    %cst = arith.constant dense<0.000000e+00> : vector<8x256xf32>
    %9 = tpu.matmul %6, %8, %cst {dimension_numbers = #tpu.dot_dimension_numbers<[1], [0], [0], [1], [0, 0, 1, 1], [], []>} : vector<8x128xbf16>, vector<128x256xbf16>, vector<8x256xf32> -> vector<8x256xf32>
    %c0_10 = arith.constant 0 : index
    %c0_11 = arith.constant 0 : index
    %10 = vector.load %arg6[%c0_10, %c0_11] : memref<1x896xf32, #tpu.memory_space<vmem>>, vector<1x256xf32>
    %11 = vector.broadcast %10 : vector<1x256xf32> to vector<8x256xf32>
    %12 = arith.addf %9, %11 : vector<8x256xf32>
    %c0_12 = arith.constant 0 : index
    %c256 = arith.constant 256 : index
    %13 = vector.load %arg4[%c0_12, %c256] : memref<128x768xbf16, #tpu.memory_space<vmem>>, vector<128x512xbf16>
    %cst_13 = arith.constant dense<0.000000e+00> : vector<8x512xf32>
    %14 = tpu.matmul %7, %13, %cst_13 {dimension_numbers = #tpu.dot_dimension_numbers<[1], [0], [0], [1], [0, 0, 1, 1], [], []>} : vector<8x128xbf16>, vector<128x512xbf16>, vector<8x512xf32> -> vector<8x512xf32>
    %c0_14 = arith.constant 0 : index
    %c256_15 = arith.constant 256 : index
    %15 = vector.load %arg6[%c0_14, %c256_15] : memref<1x896xf32, #tpu.memory_space<vmem>>, vector<1x512xf32>
    %16 = vector.broadcast %15 : vector<1x512xf32> to vector<8x512xf32>
    %17 = arith.addf %14, %16 : vector<8x512xf32>
    %18 = vector.extract_strided_slice %12 {offsets = [0, 0], sizes = [8, 32], strides = [1, 1]} : vector<8x256xf32> to vector<8x32xf32>
    %19 = vector.extract_strided_slice %12 {offsets = [0, 32], sizes = [8, 32], strides = [1, 1]} : vector<8x256xf32> to vector<8x32xf32>
    %20 = vector.extract_strided_slice %12 {offsets = [0, 64], sizes = [8, 32], strides = [1, 1]} : vector<8x256xf32> to vector<8x32xf32>
    %21 = vector.extract_strided_slice %12 {offsets = [0, 96], sizes = [8, 32], strides = [1, 1]} : vector<8x256xf32> to vector<8x32xf32>
    %22 = vector.extract_strided_slice %12 {offsets = [0, 128], sizes = [8, 32], strides = [1, 1]} : vector<8x256xf32> to vector<8x32xf32>
    %23 = vector.extract_strided_slice %12 {offsets = [0, 160], sizes = [8, 32], strides = [1, 1]} : vector<8x256xf32> to vector<8x32xf32>
    %24 = vector.extract_strided_slice %12 {offsets = [0, 192], sizes = [8, 32], strides = [1, 1]} : vector<8x256xf32> to vector<8x32xf32>
    %25 = vector.extract_strided_slice %12 {offsets = [0, 224], sizes = [8, 32], strides = [1, 1]} : vector<8x256xf32> to vector<8x32xf32>
    %26 = vector.shape_cast %18 : vector<8x32xf32> to vector<1x8x32xf32>
    %27 = vector.shape_cast %19 : vector<8x32xf32> to vector<1x8x32xf32>
    %28 = vector.shape_cast %20 : vector<8x32xf32> to vector<1x8x32xf32>
    %29 = vector.shape_cast %21 : vector<8x32xf32> to vector<1x8x32xf32>
    %30 = vector.shape_cast %22 : vector<8x32xf32> to vector<1x8x32xf32>
    %31 = vector.shape_cast %23 : vector<8x32xf32> to vector<1x8x32xf32>
    %32 = vector.shape_cast %24 : vector<8x32xf32> to vector<1x8x32xf32>
    %33 = vector.shape_cast %25 : vector<8x32xf32> to vector<1x8x32xf32>
    %34 = tpu.concatenate %26, %27, %28, %29, %30, %31, %32, %33 in 0 : vector<1x8x32xf32>, vector<1x8x32xf32>, vector<1x8x32xf32>, vector<1x8x32xf32>, vector<1x8x32xf32>, vector<1x8x32xf32>, vector<1x8x32xf32>, vector<1x8x32xf32> -> vector<8x8x32xf32>
    %35 = arith.truncf %34 : vector<8x8x32xf32> to vector<8x8x32xbf16>
    %36 = vector.extract_strided_slice %17 {offsets = [0, 0], sizes = [8, 32], strides = [1, 1]} : vector<8x512xf32> to vector<8x32xf32>
    %37 = vector.extract_strided_slice %17 {offsets = [0, 32], sizes = [8, 32], strides = [1, 1]} : vector<8x512xf32> to vector<8x32xf32>
    %38 = vector.extract_strided_slice %17 {offsets = [0, 64], sizes = [8, 32], strides = [1, 1]} : vector<8x512xf32> to vector<8x32xf32>
    %39 = vector.extract_strided_slice %17 {offsets = [0, 96], sizes = [8, 32], strides = [1, 1]} : vector<8x512xf32> to vector<8x32xf32>
    %40 = vector.extract_strided_slice %17 {offsets = [0, 128], sizes = [8, 32], strides = [1, 1]} : vector<8x512xf32> to vector<8x32xf32>
    %41 = vector.extract_strided_slice %17 {offsets = [0, 160], sizes = [8, 32], strides = [1, 1]} : vector<8x512xf32> to vector<8x32xf32>
    %42 = vector.extract_strided_slice %17 {offsets = [0, 192], sizes = [8, 32], strides = [1, 1]} : vector<8x512xf32> to vector<8x32xf32>
    %43 = vector.extract_strided_slice %17 {offsets = [0, 224], sizes = [8, 32], strides = [1, 1]} : vector<8x512xf32> to vector<8x32xf32>
    %44 = vector.shape_cast %36 : vector<8x32xf32> to vector<1x8x32xf32>
    %45 = vector.shape_cast %37 : vector<8x32xf32> to vector<1x8x32xf32>
    %46 = vector.shape_cast %38 : vector<8x32xf32> to vector<1x8x32xf32>
    %47 = vector.shape_cast %39 : vector<8x32xf32> to vector<1x8x32xf32>
    %48 = vector.shape_cast %40 : vector<8x32xf32> to vector<1x8x32xf32>
    %49 = vector.shape_cast %41 : vector<8x32xf32> to vector<1x8x32xf32>
    %50 = vector.shape_cast %42 : vector<8x32xf32> to vector<1x8x32xf32>
    %51 = vector.shape_cast %43 : vector<8x32xf32> to vector<1x8x32xf32>
    %52 = tpu.concatenate %44, %45, %46, %47, %48, %49, %50, %51 in 0 : vector<1x8x32xf32>, vector<1x8x32xf32>, vector<1x8x32xf32>, vector<1x8x32xf32>, vector<1x8x32xf32>, vector<1x8x32xf32>, vector<1x8x32xf32>, vector<1x8x32xf32> -> vector<8x8x32xf32>
    %53 = arith.truncf %52 : vector<8x8x32xf32> to vector<8x8x32xbf16>
    %54 = vector.extract_strided_slice %17 {offsets = [0, 256], sizes = [8, 32], strides = [1, 1]} : vector<8x512xf32> to vector<8x32xf32>
    %55 = vector.extract_strided_slice %17 {offsets = [0, 288], sizes = [8, 32], strides = [1, 1]} : vector<8x512xf32> to vector<8x32xf32>
    %56 = vector.extract_strided_slice %17 {offsets = [0, 320], sizes = [8, 32], strides = [1, 1]} : vector<8x512xf32> to vector<8x32xf32>
    %57 = vector.extract_strided_slice %17 {offsets = [0, 352], sizes = [8, 32], strides = [1, 1]} : vector<8x512xf32> to vector<8x32xf32>
    %58 = vector.extract_strided_slice %17 {offsets = [0, 384], sizes = [8, 32], strides = [1, 1]} : vector<8x512xf32> to vector<8x32xf32>
    %59 = vector.extract_strided_slice %17 {offsets = [0, 416], sizes = [8, 32], strides = [1, 1]} : vector<8x512xf32> to vector<8x32xf32>
    %60 = vector.extract_strided_slice %17 {offsets = [0, 448], sizes = [8, 32], strides = [1, 1]} : vector<8x512xf32> to vector<8x32xf32>
    %61 = vector.extract_strided_slice %17 {offsets = [0, 480], sizes = [8, 32], strides = [1, 1]} : vector<8x512xf32> to vector<8x32xf32>
    %62 = vector.shape_cast %54 : vector<8x32xf32> to vector<1x8x32xf32>
    %63 = vector.shape_cast %55 : vector<8x32xf32> to vector<1x8x32xf32>
    %64 = vector.shape_cast %56 : vector<8x32xf32> to vector<1x8x32xf32>
    %65 = vector.shape_cast %57 : vector<8x32xf32> to vector<1x8x32xf32>
    %66 = vector.shape_cast %58 : vector<8x32xf32> to vector<1x8x32xf32>
    %67 = vector.shape_cast %59 : vector<8x32xf32> to vector<1x8x32xf32>
    %68 = vector.shape_cast %60 : vector<8x32xf32> to vector<1x8x32xf32>
    %69 = vector.shape_cast %61 : vector<8x32xf32> to vector<1x8x32xf32>
    %70 = tpu.concatenate %62, %63, %64, %65, %66, %67, %68, %69 in 0 : vector<1x8x32xf32>, vector<1x8x32xf32>, vector<1x8x32xf32>, vector<1x8x32xf32>, vector<1x8x32xf32>, vector<1x8x32xf32>, vector<1x8x32xf32>, vector<1x8x32xf32> -> vector<8x8x32xf32>
    %71 = arith.truncf %70 : vector<8x8x32xf32> to vector<8x8x32xbf16>
    "tpu.trace_start"() <{level = 10 : i32, message = "hqd,hkd->hqk"}> : () -> ()
    %cst_16 = arith.constant dense<0.000000e+00> : vector<8x8x8xf32>
    %72 = tpu.matmul %35, %53, %cst_16 {dimension_numbers = #tpu.dot_dimension_numbers<[2], [2], [1], [1], [0, 0, 0, 1, 1, 1], [0], [0]>} : vector<8x8x32xbf16>, vector<8x8x32xbf16>, vector<8x8x8xf32> -> vector<8x8x8xf32>
    "tpu.trace_stop"() : () -> ()
    %73 = vector.shape_cast %5 : vector<8x8xf32> to vector<1x8x8xf32>
    %74 = vector.broadcast %73 : vector<1x8x8xf32> to vector<8x8x8xf32>
    %75 = arith.addf %72, %74 : vector<8x8x8xf32>
    %cst_17 = arith.constant dense<0xFF800000> : vector<8x8xf32>
    %76 = vector.multi_reduction <maximumf>, %75, %cst_17 [2] : vector<8x8x8xf32> to vector<8x8xf32>
    %77 = vector.shape_cast %76 : vector<8x8xf32> to vector<8x8x1xf32>
    %78 = vector.broadcast %77 : vector<8x8x1xf32> to vector<8x8x8xf32>
    %79 = arith.subf %75, %78 : vector<8x8x8xf32>
    %80 = math.exp %79 : vector<8x8x8xf32>
    %cst_18 = arith.constant dense<0.000000e+00> : vector<8x8xf32>
    %81 = vector.multi_reduction <add>, %80, %cst_18 [2] : vector<8x8x8xf32> to vector<8x8xf32>
    %82 = vector.shape_cast %81 : vector<8x8xf32> to vector<8x8x1xf32>
    %83 = vector.broadcast %82 : vector<8x8x1xf32> to vector<8x8x8xf32>
    %84 = arith.divf %80, %83 : vector<8x8x8xf32>
    %85 = arith.truncf %84 : vector<8x8x8xf32> to vector<8x8x8xbf16>
    "tpu.trace_start"() <{level = 10 : i32, message = "hqk,hkd->hqd"}> : () -> ()
    %cst_19 = arith.constant dense<0.000000e+00> : vector<8x8x32xf32>
    %86 = tpu.matmul %85, %71, %cst_19 {dimension_numbers = #tpu.dot_dimension_numbers<[2], [1], [1], [2], [0, 0, 0, 1, 1, 2], [0], [0]>} : vector<8x8x8xbf16>, vector<8x8x32xbf16>, vector<8x8x32xf32> -> vector<8x8x32xf32>
    "tpu.trace_stop"() : () -> ()
    %87 = vector.extract_strided_slice %86 {offsets = [0, 0, 0], sizes = [1, 8, 32], strides = [1, 1, 1]} : vector<8x8x32xf32> to vector<1x8x32xf32>
    %88 = vector.shape_cast %87 : vector<1x8x32xf32> to vector<8x32xf32>
    %89 = vector.extract_strided_slice %86 {offsets = [1, 0, 0], sizes = [1, 8, 32], strides = [1, 1, 1]} : vector<8x8x32xf32> to vector<1x8x32xf32>
    %90 = vector.shape_cast %89 : vector<1x8x32xf32> to vector<8x32xf32>
    %91 = vector.extract_strided_slice %86 {offsets = [2, 0, 0], sizes = [1, 8, 32], strides = [1, 1, 1]} : vector<8x8x32xf32> to vector<1x8x32xf32>
    %92 = vector.shape_cast %91 : vector<1x8x32xf32> to vector<8x32xf32>
    %93 = vector.extract_strided_slice %86 {offsets = [3, 0, 0], sizes = [1, 8, 32], strides = [1, 1, 1]} : vector<8x8x32xf32> to vector<1x8x32xf32>
    %94 = vector.shape_cast %93 : vector<1x8x32xf32> to vector<8x32xf32>
    %95 = vector.extract_strided_slice %86 {offsets = [4, 0, 0], sizes = [1, 8, 32], strides = [1, 1, 1]} : vector<8x8x32xf32> to vector<1x8x32xf32>
    %96 = vector.shape_cast %95 : vector<1x8x32xf32> to vector<8x32xf32>
    %97 = vector.extract_strided_slice %86 {offsets = [5, 0, 0], sizes = [1, 8, 32], strides = [1, 1, 1]} : vector<8x8x32xf32> to vector<1x8x32xf32>
    %98 = vector.shape_cast %97 : vector<1x8x32xf32> to vector<8x32xf32>
    %99 = vector.extract_strided_slice %86 {offsets = [6, 0, 0], sizes = [1, 8, 32], strides = [1, 1, 1]} : vector<8x8x32xf32> to vector<1x8x32xf32>
    %100 = vector.shape_cast %99 : vector<1x8x32xf32> to vector<8x32xf32>
    %101 = vector.extract_strided_slice %86 {offsets = [7, 0, 0], sizes = [1, 8, 32], strides = [1, 1, 1]} : vector<8x8x32xf32> to vector<1x8x32xf32>
    %102 = vector.shape_cast %101 : vector<1x8x32xf32> to vector<8x32xf32>
    %103 = tpu.concatenate %88, %90, %92, %94, %96, %98, %100, %102 in 1 : vector<8x32xf32>, vector<8x32xf32>, vector<8x32xf32>, vector<8x32xf32>, vector<8x32xf32>, vector<8x32xf32>, vector<8x32xf32>, vector<8x32xf32> -> vector<8x256xf32>
    %104 = arith.truncf %103 : vector<8x256xf32> to vector<8x256xbf16>
    %c0_20 = arith.constant 0 : index
    %c0_21 = arith.constant 0 : index
    %105 = vector.load %arg5[%c0_20, %c0_21] : memref<256x128xbf16, #tpu.memory_space<vmem>>, vector<256x128xbf16>
    %cst_22 = arith.constant dense<0.000000e+00> : vector<8x128xf32>
    %106 = tpu.matmul %104, %105, %cst_22 {dimension_numbers = #tpu.dot_dimension_numbers<[1], [0], [0], [1], [0, 0, 1, 1], [], []>} : vector<8x256xbf16>, vector<256x128xbf16>, vector<8x128xf32> -> vector<8x128xf32>
    %c0_23 = arith.constant 0 : index
    %c768 = arith.constant 768 : index
    %107 = vector.load %arg6[%c0_23, %c768] : memref<1x896xf32, #tpu.memory_space<vmem>>, vector<1x128xf32>
    %108 = vector.broadcast %107 : vector<1x128xf32> to vector<8x128xf32>
    %109 = arith.addf %106, %108 : vector<8x128xf32>
    %110 = arith.addf %109, %1 : vector<8x128xf32>
    %cst_24 = arith.constant dense<0.000000e+00> : vector<8xf32>
    %111 = vector.multi_reduction <add>, %110, %cst_24 [1] : vector<8x128xf32> to vector<8xf32>
    %112 = vector.shape_cast %111 : vector<8xf32> to vector<8x1xf32>
    %cst_25 = arith.constant 1.280000e+02 : f32
    %113 = vector.broadcast %cst_25 : f32 to vector<8x1xf32>
    %114 = arith.divf %112, %113 : vector<8x1xf32>
    %115 = vector.broadcast %114 : vector<8x1xf32> to vector<8x128xf32>
    %116 = arith.subf %110, %115 : vector<8x128xf32>
    %117 = arith.mulf %116, %116 : vector<8x128xf32>
    %cst_26 = arith.constant dense<0.000000e+00> : vector<8xf32>
    %118 = vector.multi_reduction <add>, %117, %cst_26 [1] : vector<8x128xf32> to vector<8xf32>
    %119 = vector.shape_cast %118 : vector<8xf32> to vector<8x1xf32>
    %cst_27 = arith.constant 1.270000e+02 : f32
    %120 = vector.broadcast %cst_27 : f32 to vector<8x1xf32>
    %121 = arith.divf %119, %120 : vector<8x1xf32>
    %122 = vector.broadcast %114 : vector<8x1xf32> to vector<8x128xf32>
    %123 = arith.subf %110, %122 : vector<8x128xf32>
    %cst_28 = arith.constant 9.99999993E-9 : f32
    %124 = vector.broadcast %cst_28 : f32 to vector<8x1xf32>
    %125 = arith.addf %121, %124 : vector<8x1xf32>
    %126 = math.rsqrt %125 : vector<8x1xf32>
    %127 = vector.broadcast %126 : vector<8x1xf32> to vector<8x128xf32>
    %128 = arith.mulf %123, %127 : vector<8x128xf32>
    %c0_29 = arith.constant 0 : index
    %129 = memref.load %arg7[%c0_29] : memref<2xf32, #tpu.memory_space<smem>>
    %130 = vector.broadcast %129 : f32 to vector<8x128xf32>
    %131 = arith.mulf %130, %128 : vector<8x128xf32>
    %c1 = arith.constant 1 : index
    %132 = memref.load %arg7[%c1] : memref<2xf32, #tpu.memory_space<smem>>
    %133 = vector.broadcast %132 : f32 to vector<8x128xf32>
    %134 = arith.addf %131, %133 : vector<8x128xf32>
    %c0_30 = arith.constant 0 : index
    %c0_31 = arith.constant 0 : index
    %c0_32 = arith.constant 0 : index
    %135 = vector.load %arg8[%c0_30, %c0_31, %c0_32] : memref<1x8x128xf32, #tpu.memory_space<vmem>>, vector<1x8x128xf32>
    %136 = vector.shape_cast %135 : vector<1x8x128xf32> to vector<8x128xf32>
    %137 = vector.shape_cast %134 : vector<8x128xf32> to vector<1x8x128xf32>
    tpu.vector_store %arg8[%c0_30, %c0_31, %c0_32], %137 {strides = array<i32>} : memref<1x8x128xf32, #tpu.memory_space<vmem>>, vector<1x8x128xf32>,
    return
  }
  func.func @transform_0(%arg0: i32) -> (i32, i32, i32) {
    %c0_i32 = arith.constant 0 : i32
    %c0_i32_0 = arith.constant 0 : i32
    %c0_i32_1 = arith.constant 0 : i32
    return %arg0, %c0_i32, %c0_i32_0 : i32, i32, i32
  }
  func.func @transform_1(%arg0: i32) -> (i32, i32, i32) {
    %c0_i32 = arith.constant 0 : i32
    %c0_i32_0 = arith.constant 0 : i32
    %c0_i32_1 = arith.constant 0 : i32
    return %arg0, %c0_i32, %c0_i32_0 : i32, i32, i32
  }
  func.func @transform_2(%arg0: i32) -> (i32, i32, i32) {
    %c0_i32 = arith.constant 0 : i32
    %c0_i32_0 = arith.constant 0 : i32
    %c0_i32_1 = arith.constant 0 : i32
    %c0_i32_2 = arith.constant 0 : i32
    return %c0_i32, %c0_i32_0, %c0_i32_1 : i32, i32, i32
  }
  func.func @transform_3(%arg0: i32) -> (i32, i32) {
    %c0_i32 = arith.constant 0 : i32
    %c0_i32_0 = arith.constant 0 : i32
    %c0_i32_1 = arith.constant 0 : i32
    return %c0_i32, %c0_i32_0 : i32, i32
  }
  func.func @transform_4(%arg0: i32) -> (i32, i32) {
    %c0_i32 = arith.constant 0 : i32
    %c0_i32_0 = arith.constant 0 : i32
    %c0_i32_1 = arith.constant 0 : i32
    return %c0_i32, %c0_i32_0 : i32, i32
  }
  func.func @transform_5(%arg0: i32) -> (i32, i32) {
    %c0_i32 = arith.constant 0 : i32
    %c0_i32_0 = arith.constant 0 : i32
    %c0_i32_1 = arith.constant 0 : i32
    return %c0_i32, %c0_i32_0 : i32, i32
  }
  func.func @transform_6(%arg0: i32) -> i32 {
    %c0_i32 = arith.constant 0 : i32
    %c0_i32_0 = arith.constant 0 : i32
    return %c0_i32 : i32
  }
  func.func @transform_7(%arg0: i32) -> (i32, i32, i32) {
    %c0_i32 = arith.constant 0 : i32
    %c0_i32_0 = arith.constant 0 : i32
    %c0_i32_1 = arith.constant 0 : i32
    return %arg0, %c0_i32, %c0_i32_0 : i32, i32, i32
  }
}

</mosaic_0001>

<llo_original>
// kernel: tpu_custom_call.1
$region0: #{tpu_custom_call.1}
  #allocation0 [shape = 'u32[]', space=smem, size = 0x4, offset = 0x4, fixed_abs, tag = 'smem constant byte address 0x4 - core index']
  #allocation1 [shape = 'u32[144,128]{1,0:T(1,128)}', space=vmem, size = 0x12000, scoped, tag = 'internal scratch']
  %s0 = inlined_call_operand.hbm [shape: f32[2,8,128], index: 0, kind: input, shape index: {}]
  %s1 = inlined_call_operand.hbm [shape: f32[2,8,128], index: 1, kind: input, shape index: {}]
  %s2 = inlined_call_operand.hbm [shape: f32[1,8,8], index: 2, kind: input, shape index: {}]
  %s3 = inlined_call_operand.hbm [shape: bf16[128,768], index: 3, kind: input, shape index: {}]
  %s4 = inlined_call_operand.hbm [shape: bf16[256,128], index: 4, kind: input, shape index: {}]
  %s5 = inlined_call_operand.vmem [shape: f32[1,896], index: 5, kind: input, shape index: {}]
  %s6 = inlined_call_operand.vmem [shape: f32[2], index: 6, kind: input, shape index: {}]
  %s7 = inlined_call_operand.hbm [shape: f32[2,8,128], index: 7, kind: output, shape index: {}]
  %s8 = sld [smem:[#allocation0]]
  $region85: #{tpu_custom_call.1} parent=0
    _
  %s10 = ssub.s32 1, %s8
  %s11 = scalar_select 0, %s10, %s8
  $region1: #{tpu_custom_call.1} parent=0
    #allocation2 [shape = 'u8[8192]{0}', space=vmem, size = 0x2000, scoped, tag = 'input window, operand 0']
    #allocation3 [shape = 's32[2]{0}', space=sflag, size = 0x8, scoped, tag = 'scoped memory for tpu_custom_call.1']
    #allocation4 [shape = 's32[2]{0}', space=sflag, size = 0x8, scoped, tag = 'scoped memory for tpu_custom_call.1']
    #allocation5 [shape = 's32[2]{0}', space=sflag, size = 0x8, scoped, tag = 'scoped memory for tpu_custom_call.1']
    #allocation6 [shape = 'u8[8192]{0}', space=vmem, size = 0x2000, scoped, tag = 'input window, operand 1']
    #allocation7 [shape = 's32[2]{0}', space=sflag, size = 0x8, scoped, tag = 'scoped memory for tpu_custom_call.1']
    #allocation8 [shape = 'u8[4096]{0}', space=vmem, size = 0x1000, scoped, tag = 'input window, operand 2, single buffered']
    #allocation9 [shape = 'u8[196608]{0}', space=vmem, size = 0x30000, scoped, tag = 'input window, operand 3, single buffered']
    #allocation10 [shape = 's32[1]{0}', space=sflag, size = 0x4, scoped, tag = 'scoped memory for tpu_custom_call.1']
    #allocation11 [shape = 'u8[65536]{0}', space=vmem, size = 0x10000, scoped, tag = 'input window, operand 4, single buffered']
    #allocation12 [shape = 'u8[512]{0}', space=smem, size = 0x200, scoped, tag = 'input window, operand 6, single buffered']
    #allocation13 [shape = 'u8[8192]{0}', space=vmem, size = 0x2000, scoped, tag = 'output window, operand 0']
    %12 = vsyncpa [#allocation3], 0
    %s13 = scalar_lea.sflag [#allocation3], 1
    %14 = vsyncpa %s13, 0
    %15 = vsyncpa [#allocation7], 0
    %s16 = scalar_lea.sflag [#allocation7], 1
    %17 = vsyncpa %s16, 0
    %18 = vsyncpa [#allocation10], 0
    %19 = vsyncpa [#allocation5], 0
    %20 = vsyncpa [#allocation4], 0
    %s21 = scalar_lea.sflag [#allocation4], 1
    %22 = vsyncpa %s21, 0
    loop: start=0, step=1, limit=4
    $region2: #{tpu_custom_call.1} parent=1 // loop_pre_header
      _
    $region3: #{tpu_custom_call.1} parent=1 // loop_header
      %s24 = sphi 0, %s28
      %p25 = scmp.ge.s32.totalorder %s24, 4
      %s34 = sphi 0, %s36
      %s37 = sphi 0, %s34
      %s38 = sphi 0, %s37
      %s54 = sphi 0, %s38
      %s60 = sphi 0, %s62
      %s63 = sphi 0, %s60
      %s64 = sphi 0, %s63
      %s80 = sphi 0, %s64
      %s84 = sphi 0, %s84
      %s86 = sphi 0, %s84
      %s87 = sphi 0, %s86
      %s101 = sphi 0, %s87
      %s105 = sphi 0, %s105
      %s107 = sphi 0, %s105
      %s108 = sphi 0, %s107
      %s122 = sphi 0, %s108
      %s126 = sphi 0, %s126
      %s128 = sphi 0, %s126
      %s129 = sphi 0, %s128
      %s143 = sphi 0, %s129
      %s147 = sphi 0, %s147
      %s149 = sphi 0, %s147
      %s150 = sphi 0, %s149
      %s164 = sphi 0, %s150
      %s168 = sphi 0, %s168
      %s170 = sphi 0, %s168
      %s171 = sphi 0, %s170
      %s185 = sphi 0, %s171
      %s191 = sphi 0, %s193
      %s194 = sphi 0, %s191
      %s195 = sphi 0, %s194
      %s211 = sphi 0, %s195
    $region4: #{tpu_custom_call.1} parent=1 // loop_header_branch
      %27 = sbr.rel (%p25) target = $region8
    $region5: #{tpu_custom_call.1} parent=1 // loop_body
      %s29 = ssub.s32 %s24, 1
      %s30 = ssub.s32 %s24, 2
      %s31 = sadd.s32 %s24, 1
      %s32 = ssub.s32 %s24, %s31
      %p33 = scmp.eq.s32.totalorder %s32, 0
      %s35 = sadd.s32 %s34, 1
      %s36 = scalar_select %p33, %s34, %s35
      %p39 = pneg %p33
      %p40 = scmp.eq.s32.totalorder %s24, 1
      %p41 = por %p39, %p40
      %p42 = scmp.ne.s32.totalorder %s34, %s37
      %p43 = scmp.eq.s32.totalorder %s24, 0
      %p44 = por %p42, %p43
      %p45 = scmp.ne.s32.totalorder %s34, %s37
      %p46 = scmp.eq.s32.totalorder %s29, 1
      %p47 = por %p45, %p46
      %p48 = scmp.ne.s32.totalorder %s37, %s38
      %p49 = scmp.eq.s32.totalorder %s29, 0
      %p50 = por %p48, %p49
      %p51 = scmp.ne.s32.totalorder %s37, %s38
      %p52 = scmp.eq.s32.totalorder %s30, 1
      %p53 = por %p51, %p52
      %p55 = scmp.ne.s32.totalorder %s38, %s54
      %p56 = scmp.eq.s32.totalorder %s30, 0
      %p57 = por %p55, %p56
      %s58 = ssub.s32 %s24, %s31
      %p59 = scmp.eq.s32.totalorder %s58, 0
      %s61 = sadd.s32 %s60, 1
      %s62 = scalar_select %p59, %s60, %s61
      %p65 = pneg %p59
      %p66 = scmp.eq.s32.totalorder %s24, 1
      %p67 = por %p65, %p66
      %p68 = scmp.ne.s32.totalorder %s60, %s63
      %p69 = scmp.eq.s32.totalorder %s24, 0
      %p70 = por %p68, %p69
      %p71 = scmp.ne.s32.totalorder %s60, %s63
      %p72 = scmp.eq.s32.totalorder %s29, 1
      %p73 = por %p71, %p72
      %p74 = scmp.ne.s32.totalorder %s63, %s64
      %p75 = scmp.eq.s32.totalorder %s29, 0
      %p76 = por %p74, %p75
      %p77 = scmp.ne.s32.totalorder %s63, %s64
      %p78 = scmp.eq.s32.totalorder %s30, 1
      %p79 = por %p77, %p78
      %p81 = scmp.ne.s32.totalorder %s64, %s80
      %p82 = scmp.eq.s32.totalorder %s30, 0
      %p83 = por %p81, %p82
      %s85 = sadd.s32 %s84, 1
      %p88 = scmp.eq.s32.totalorder %s24, 1
      %p89 = scmp.ne.s32.totalorder %s84, %s86
      %p90 = scmp.eq.s32.totalorder %s24, 0
      %p91 = por %p89, %p90
      %p92 = scmp.ne.s32.totalorder %s84, %s86
      %p93 = scmp.eq.s32.totalorder %s29, 1
      %p94 = por %p92, %p93
      %p95 = scmp.ne.s32.totalorder %s86, %s87
      %p96 = scmp.eq.s32.totalorder %s29, 0
      %p97 = por %p95, %p96
      %p98 = scmp.ne.s32.totalorder %s86, %s87
      %p99 = scmp.eq.s32.totalorder %s30, 1
      %p100 = por %p98, %p99
      %p102 = scmp.ne.s32.totalorder %s87, %s101
      %p103 = scmp.eq.s32.totalorder %s30, 0
      %p104 = por %p102, %p103
      %s106 = sadd.s32 %s105, 1
      %p109 = scmp.eq.s32.totalorder %s24, 1
      %p110 = scmp.ne.s32.totalorder %s105, %s107
      %p111 = scmp.eq.s32.totalorder %s24, 0
      %p112 = por %p110, %p111
      %p113 = scmp.ne.s32.totalorder %s105, %s107
      %p114 = scmp.eq.s32.totalorder %s29, 1
      %p115 = por %p113, %p114
      %p116 = scmp.ne.s32.totalorder %s107, %s108
      %p117 = scmp.eq.s32.totalorder %s29, 0
      %p118 = por %p116, %p117
      %p119 = scmp.ne.s32.totalorder %s107, %s108
      %p120 = scmp.eq.s32.totalorder %s30, 1
      %p121 = por %p119, %p120
      %p123 = scmp.ne.s32.totalorder %s108, %s122
      %p124 = scmp.eq.s32.totalorder %s30, 0
      %p125 = por %p123, %p124
      %s127 = sadd.s32 %s126, 1
      %p130 = scmp.eq.s32.totalorder %s24, 1
      %p131 = scmp.ne.s32.totalorder %s126, %s128
      %p132 = scmp.eq.s32.totalorder %s24, 0
      %p133 = por %p131, %p132
      %p134 = scmp.ne.s32.totalorder %s126, %s128
      %p135 = scmp.eq.s32.totalorder %s29, 1
      %p136 = por %p134, %p135
      %p137 = scmp.ne.s32.totalorder %s128, %s129
      %p138 = scmp.eq.s32.totalorder %s29, 0
      %p139 = por %p137, %p138
      %p140 = scmp.ne.s32.totalorder %s128, %s129
      %p141 = scmp.eq.s32.totalorder %s30, 1
      %p142 = por %p140, %p141
      %p144 = scmp.ne.s32.totalorder %s129, %s143
      %p145 = scmp.eq.s32.totalorder %s30, 0
      %p146 = por %p144, %p145
      %s148 = sadd.s32 %s147, 1
      %p151 = scmp.eq.s32.totalorder %s24, 1
      %p152 = scmp.ne.s32.totalorder %s147, %s149
      %p153 = scmp.eq.s32.totalorder %s24, 0
      %p154 = por %p152, %p153
      %p155 = scmp.ne.s32.totalorder %s147, %s149
      %p156 = scmp.eq.s32.totalorder %s29, 1
      %p157 = por %p155, %p156
      %p158 = scmp.ne.s32.totalorder %s149, %s150
      %p159 = scmp.eq.s32.totalorder %s29, 0
      %p160 = por %p158, %p159
      %p161 = scmp.ne.s32.totalorder %s149, %s150
      %p162 = scmp.eq.s32.totalorder %s30, 1
      %p163 = por %p161, %p162
      %p165 = scmp.ne.s32.totalorder %s150, %s164
      %p166 = scmp.eq.s32.totalorder %s30, 0
      %p167 = por %p165, %p166
      %s169 = sadd.s32 %s168, 1
      %p172 = scmp.eq.s32.totalorder %s24, 1
      %p173 = scmp.ne.s32.totalorder %s168, %s170
      %p174 = scmp.eq.s32.totalorder %s24, 0
      %p175 = por %p173, %p174
      %p176 = scmp.ne.s32.totalorder %s168, %s170
      %p177 = scmp.eq.s32.totalorder %s29, 1
      %p178 = por %p176, %p177
      %p179 = scmp.ne.s32.totalorder %s170, %s171
      %p180 = scmp.eq.s32.totalorder %s29, 0
      %p181 = por %p179, %p180
      %p182 = scmp.ne.s32.totalorder %s170, %s171
      %p183 = scmp.eq.s32.totalorder %s30, 1
      %p184 = por %p182, %p183
      %p186 = scmp.ne.s32.totalorder %s171, %s185
      %p187 = scmp.eq.s32.totalorder %s30, 0
      %p188 = por %p186, %p187
      %s189 = ssub.s32 %s24, %s31
      %p190 = scmp.eq.s32.totalorder %s189, 0
      %s192 = sadd.s32 %s191, 1
      %s193 = scalar_select %p190, %s191, %s192
      %p196 = pneg %p190
      %p197 = scmp.eq.s32.totalorder %s24, 1
      %p198 = por %p196, %p197
      %p199 = scmp.ne.s32.totalorder %s191, %s194
      %p200 = scmp.eq.s32.totalorder %s24, 0
      %p201 = por %p199, %p200
      %p202 = scmp.ne.s32.totalorder %s191, %s194
      %p203 = scmp.eq.s32.totalorder %s29, 1
      %p204 = por %p202, %p203
      %p205 = scmp.ne.s32.totalorder %s194, %s195
      %p206 = scmp.eq.s32.totalorder %s29, 0
      %p207 = por %p205, %p206
      %p208 = scmp.ne.s32.totalorder %s194, %s195
      %p209 = scmp.eq.s32.totalorder %s30, 1
      %p210 = por %p208, %p209
      %p212 = scmp.ne.s32.totalorder %s195, %s211
      %p213 = scmp.eq.s32.totalorder %s30, 0
      %p214 = por %p212, %p213
      %p215 = scmp.le.s32.totalorder 1, %s24
      %p216 = scmp.lt.s32.totalorder %s24, 3
      %p217 = pnand %p215, %p216
      %p218 = pneg %p217
      // Predicated region
      $region9: #{tpu_custom_call.1} parent=5 // pred_check
        _
      $region10: #{tpu_custom_call.1} parent=5 // pred_check_branch
        %220 = sbr.rel (%p217) target = $region12
      $region11: #{tpu_custom_call.1} parent=5 // pred_region
        %s221 = ssub.s32 %s24, 1
        // Predicated region
        $region13: #{tpu_custom_call.1} parent=11 // pred_check
          %p222 = pneg %p97
        $region14: #{tpu_custom_call.1} parent=11 // pred_check_branch
          %224 = sbr.rel (%p222) target = $region16
        $region15: #{tpu_custom_call.1} parent=11 // pred_region
          %s226 = ssub.s32 128, 128
          %227 = vsyncadd [#allocation7], %s226
          %s229 = sshll.u32 [#allocation8], 4
          %s230 = int_to_ptr.vmem [resolvable:$true] %s229
          %232 = dma.hbm_to_vmem [thread:$0]  %s2, 128, %s230, [#allocation7]
        $region16: #{tpu_custom_call.1} parent=11 // pred_fallthru
          _
        // Predicated region
        $region17: #{tpu_custom_call.1} parent=11 // pred_check
          %p233 = pneg %p118
        $region18: #{tpu_custom_call.1} parent=11 // pred_check_branch
          %235 = sbr.rel (%p233) target = $region20
        $region19: #{tpu_custom_call.1} parent=11 // pred_region
          %s237 = ssub.s32 6144, 6144
          %238 = vsyncadd [#allocation10], %s237
          %s239 = sshll.u32 [#allocation9], 4
          %s240 = int_to_ptr.vmem [resolvable:$true] %s239
          %245 = dma.hbm_to_vmem [thread:$0]  %s3, 6144, %s240, [#allocation10], 384, 384, 24
        $region20: #{tpu_custom_call.1} parent=11 // pred_fallthru
          _
        // Predicated region
        $region21: #{tpu_custom_call.1} parent=11 // pred_check
          %p246 = pneg %p139
        $region22: #{tpu_custom_call.1} parent=11 // pred_check_branch
          %248 = sbr.rel (%p246) target = $region24
        $region23: #{tpu_custom_call.1} parent=11 // pred_region
          %s250 = ssub.s32 2048, 2048
          %251 = vsyncadd [#allocation10], %s250
          %s252 = sshll.u32 [#allocation11], 4
          %s253 = int_to_ptr.vmem [resolvable:$true] %s252
          %258 = dma.hbm_to_vmem [thread:$0]  %s4, 2048, %s253, [#allocation10], 64, 64, 4
        $region24: #{tpu_custom_call.1} parent=11 // pred_fallthru
          _
        // Predicated region
        $region25: #{tpu_custom_call.1} parent=11 // pred_check
          %p259 = pneg %p160
        $region26: #{tpu_custom_call.1} parent=11 // pred_check_branch
          %261 = sbr.rel (%p259) target = $region28
        $region27: #{tpu_custom_call.1} parent=11 // pred_region
          _
        $region28: #{tpu_custom_call.1} parent=11 // pred_fallthru
          _
        // Predicated region
        $region29: #{tpu_custom_call.1} parent=11 // pred_check
          %p262 = pneg %p181
        $region30: #{tpu_custom_call.1} parent=11 // pred_check_branch
          %264 = sbr.rel (%p262) target = $region32
        $region31: #{tpu_custom_call.1} parent=11 // pred_region
          %s266 = ssub.s32 16, 16
          %267 = vsyncadd [#allocation5], %s266
          %s269 = sshll.u32 %s6, 4
          %s270 = int_to_ptr.vmem [resolvable:$true] %s269
          %272 = dma.vmem_to_smem %s270, 16, [#allocation12], [#allocation5]
        $region32: #{tpu_custom_call.1} parent=11 // pred_fallthru
          _
      $region12: #{tpu_custom_call.1} parent=5 // pred_fallthru
        _
      %p273 = scmp.lt.s32.totalorder %s24, 2
      // Predicated region
      $region33: #{tpu_custom_call.1} parent=5 // pred_check
        %p274 = pneg %p273
      $region34: #{tpu_custom_call.1} parent=5 // pred_check_branch
        %276 = sbr.rel (%p274) target = $region36
      $region35: #{tpu_custom_call.1} parent=5 // pred_region
        // Predicated region
        $region37: #{tpu_custom_call.1} parent=35 // pred_check
          %p277 = pneg %p44
        $region38: #{tpu_custom_call.1} parent=35 // pred_check_branch
          %279 = sbr.rel (%p277) target = $region40
        $region39: #{tpu_custom_call.1} parent=35 // pred_region
          %s280 = sand.u32 %s34, 1
          %s281 = scalar_lea.sflag [#allocation3], %s280
          %s282 = sand.u32 %s34, 1
          %s283 = smul.addr %s282, 8
          %s284 = scalar_lea.vmem [#allocation2], %s283
          %s286 = ssub.s32 128, 128
          %287 = vsyncadd %s281, %s286
          %s288 = smul.addr %s24, 128
          %s289 = scalar_lea.hbm %s0, %s288
          %s291 = sshll.u32 %s284, 4
          %s292 = int_to_ptr.vmem [resolvable:$true] %s291
          %294 = dma.hbm_to_vmem [thread:$0]  %s289, 128, %s292, %s281
        $region40: #{tpu_custom_call.1} parent=35 // pred_fallthru
          _
        // Predicated region
        $region41: #{tpu_custom_call.1} parent=35 // pred_check
          %p295 = pneg %p70
        $region42: #{tpu_custom_call.1} parent=35 // pred_check_branch
          %297 = sbr.rel (%p295) target = $region44
        $region43: #{tpu_custom_call.1} parent=35 // pred_region
          %s298 = sand.u32 %s24, 1
          %s299 = scalar_lea.sflag [#allocation7], %s298
          %s300 = sand.u32 %s60, 1
          %s301 = smul.addr %s300, 8
          %s302 = scalar_lea.vmem [#allocation6], %s301
          %s304 = ssub.s32 128, 128
          %305 = vsyncadd %s299, %s304
          %s306 = smul.addr %s24, 128
          %s307 = scalar_lea.hbm %s1, %s306
          %s309 = sshll.u32 %s302, 4
          %s310 = int_to_ptr.vmem [resolvable:$true] %s309
          %312 = dma.hbm_to_vmem [thread:$0]  %s307, 128, %s310, %s299
        $region44: #{tpu_custom_call.1} parent=35 // pred_fallthru
          _
      $region36: #{tpu_custom_call.1} parent=5 // pred_fallthru
        _
      %p313 = scmp.le.s32.totalorder 1, %s24
      %p314 = scmp.lt.s32.totalorder %s24, 3
      %p315 = pnand %p313, %p314
      %p316 = pneg %p315
      // Predicated region
      $region45: #{tpu_custom_call.1} parent=5 // pred_check
        _
      $region46: #{tpu_custom_call.1} parent=5 // pred_check_branch
        %318 = sbr.rel (%p315) target = $region48
      $region47: #{tpu_custom_call.1} parent=5 // pred_region
        %s319 = ssub.s32 %s24, 1
        %s320 = sand.u32 %s37, 1
        %s321 = scalar_lea.sflag [#allocation3], %s320
        %s322 = sand.u32 %s37, 1
        %s323 = smul.addr %s322, 8
        %s324 = scalar_lea.vmem [#allocation2], %s323
        // Predicated region
        $region49: #{tpu_custom_call.1} parent=47 // pred_check
          %p325 = pneg %p50
        $region50: #{tpu_custom_call.1} parent=47 // pred_check_branch
          %327 = sbr.rel (%p325) target = $region52
        $region51: #{tpu_custom_call.1} parent=47 // pred_region
          %328 = dma.done %s321, 128
        $region52: #{tpu_custom_call.1} parent=47 // pred_fallthru
          _
        %s329 = sand.u32 %s29, 1
        %s330 = scalar_lea.sflag [#allocation7], %s329
        %s331 = sand.u32 %s63, 1
        %s332 = smul.addr %s331, 8
        %s333 = scalar_lea.vmem [#allocation6], %s332
        // Predicated region
        $region53: #{tpu_custom_call.1} parent=47 // pred_check
          %p334 = pneg %p76
        $region54: #{tpu_custom_call.1} parent=47 // pred_check_branch
          %336 = sbr.rel (%p334) target = $region56
        $region55: #{tpu_custom_call.1} parent=47 // pred_region
          %337 = dma.done %s330, 128
        $region56: #{tpu_custom_call.1} parent=47 // pred_fallthru
          _
        // Predicated region
        $region57: #{tpu_custom_call.1} parent=47 // pred_check
          %p338 = pneg %p97
        $region58: #{tpu_custom_call.1} parent=47 // pred_check_branch
          %340 = sbr.rel (%p338) target = $region60
        $region59: #{tpu_custom_call.1} parent=47 // pred_region
          %341 = dma.done [#allocation7], 128
        $region60: #{tpu_custom_call.1} parent=47 // pred_fallthru
          _
        // Predicated region
        $region61: #{tpu_custom_call.1} parent=47 // pred_check
          %p342 = pneg %p118
        $region62: #{tpu_custom_call.1} parent=47 // pred_check_branch
          %344 = sbr.rel (%p342) target = $region64
        $region63: #{tpu_custom_call.1} parent=47 // pred_region
          %345 = dma.done [#allocation10], 6144
        $region64: #{tpu_custom_call.1} parent=47 // pred_fallthru
          _
        // Predicated region
        $region65: #{tpu_custom_call.1} parent=47 // pred_check
          %p346 = pneg %p139
        $region66: #{tpu_custom_call.1} parent=47 // pred_check_branch
          %348 = sbr.rel (%p346) target = $region68
        $region67: #{tpu_custom_call.1} parent=47 // pred_region
          %349 = dma.done [#allocation10], 2048
        $region68: #{tpu_custom_call.1} parent=47 // pred_fallthru
          _
        // Predicated region
        $region69: #{tpu_custom_call.1} parent=47 // pred_check
          %p350 = pneg %p181
        $region70: #{tpu_custom_call.1} parent=47 // pred_check_branch
          %352 = sbr.rel (%p350) target = $region72
        $region71: #{tpu_custom_call.1} parent=47 // pred_region
          %353 = dma.done [#allocation5], 16
        $region72: #{tpu_custom_call.1} parent=47 // pred_fallthru
          _
        %354 = sfence
        %s355 = sand.u32 %s37, 1
        %s356 = scalar_lea.sflag [#allocation3], %s355
        %s357 = sand.u32 %s37, 1
        %s358 = smul.addr %s357, 8
        %s359 = scalar_lea.vmem [#allocation2], %s358
        %p360 = pneg %p50
        %p361 = pneg %p47
        %s362 = sand.u32 %s29, 1
        %s363 = scalar_lea.sflag [#allocation7], %s362
        %s364 = sand.u32 %s63, 1
        %s365 = smul.addr %s364, 8
        %s366 = scalar_lea.vmem [#allocation6], %s365
        %p367 = pneg %p76
        %p368 = pneg %p73
        %p369 = pneg %p97
        %p370 = pneg %p94
        %p371 = pneg %p118
        %p372 = pneg %p115
        %p373 = pneg %p139
        %p374 = pneg %p136
        %p375 = pneg %p160
        %p376 = pneg %p157
        %p377 = pneg %p181
        %p378 = pneg %p178
        %p379 = pneg %p207
        %p380 = pneg %p204
        %s381 = sand.u32 %s194, 1
        %s382 = scalar_lea.sflag [#allocation4], %s381
        %s383 = sand.u32 %s194, 1
        %s384 = smul.addr %s383, 8
        %s385 = scalar_lea.vmem [#allocation13], %s384
        %v387 = vld [vmem:[%s333] sm:$0xff]
        %v388 = vld [vmem:[%s324] sm:$0xff]
        %v389 = vld [vmem:[#allocation8] sm:$0xff]
        %v390 = vpack.c.bf16 %v387, %v387
        %v391 = vpack.c.bf16 %v388, %v388
        %v392 = vld [vmem:[#allocation9] sm:$0xff]
        %v393 = vld [vmem:[#allocation9 + $0x18] sm:$0xff]
        %v394 = vld [vmem:[#allocation9 + $0x30] sm:$0xff]
        %v395 = vld [vmem:[#allocation9 + $0x48] sm:$0xff]
        %v396 = vld [vmem:[#allocation9 + $0x60] sm:$0xff]
        %v397 = vld [vmem:[#allocation9 + $0x78] sm:$0xff]
        %v398 = vld [vmem:[#allocation9 + $0x90] sm:$0xff]
        %v399 = vld [vmem:[#allocation9 + $0xa8] sm:$0xff]
        %v400 = vld [vmem:[#allocation9 + $0xc0] sm:$0xff]
        %v401 = vld [vmem:[#allocation9 + $0xd8] sm:$0xff]
        %v402 = vld [vmem:[#allocation9 + $0xf0] sm:$0xff]
        %v403 = vld [vmem:[#allocation9 + $0x108] sm:$0xff]
        %v404 = vld [vmem:[#allocation9 + $0x120] sm:$0xff]
        %v405 = vld [vmem:[#allocation9 + $0x138] sm:$0xff]
        %v406 = vld [vmem:[#allocation9 + $0x150] sm:$0xff]
        %v407 = vld [vmem:[#allocation9 + $0x168] sm:$0xff]
        %v408 = vld [vmem:[%s5] sm:$0x3]
        %v410 = vlaneseq
        %v411 = vshrl.u32 %v410, 7
        %v412 = vsub.s32 0, %v411
        %v413 = vrot.slane %v408, %v412
        %v414 = vlaneseq
        %v415 = vshrl.u32 %v414, 7
        %v416 = vsub.s32 1, %v415
        %v417 = vrot.slane %v408, %v416
        %v436 = vunpack.c.l.b16 %v392
        %v437 = vunpack.c.h.b16 %v392
        %v438 = vunpack.c.l.b16 %v393
        %v439 = vunpack.c.h.b16 %v393
        %v440 = vunpack.c.l.b16 %v394
        %v441 = vunpack.c.h.b16 %v394
        %v442 = vunpack.c.l.b16 %v395
        %v443 = vunpack.c.h.b16 %v395
        %v444 = vunpack.c.l.b16 %v396
        %v445 = vunpack.c.h.b16 %v396
        %v446 = vunpack.c.l.b16 %v397
        %v447 = vunpack.c.h.b16 %v397
        %v448 = vunpack.c.l.b16 %v398
        %v449 = vunpack.c.h.b16 %v398
        %v450 = vunpack.c.l.b16 %v399
        %v451 = vunpack.c.h.b16 %v399
        %v452 = vunpack.c.l.b16 %v400
        %v453 = vunpack.c.h.b16 %v400
        %v454 = vunpack.c.l.b16 %v401
        %v455 = vunpack.c.h.b16 %v401
        %v456 = vunpack.c.l.b16 %v402
        %v457 = vunpack.c.h.b16 %v402
        %v458 = vunpack.c.l.b16 %v403
        %v459 = vunpack.c.h.b16 %v403
        %v460 = vunpack.c.l.b16 %v404
        %v461 = vunpack.c.h.b16 %v404
        %v462 = vunpack.c.l.b16 %v405
        %v463 = vunpack.c.h.b16 %v405
        %v464 = vunpack.c.l.b16 %v406
        %v465 = vunpack.c.h.b16 %v406
        %v466 = vunpack.c.l.b16 %v407
        %v467 = vunpack.c.h.b16 %v407
        %v468 = vpack.c.b16 %v438, %v436
        %v469 = vpack.c.b16 %v439, %v437
        %v470 = vpack.c.b16 %v442, %v440
        %v471 = vpack.c.b16 %v443, %v441
        %v472 = vpack.c.b16 %v446, %v444
        %v473 = vpack.c.b16 %v447, %v445
        %v474 = vpack.c.b16 %v450, %v448
        %v475 = vpack.c.b16 %v451, %v449
        %v476 = vpack.c.b16 %v454, %v452
        %v477 = vpack.c.b16 %v455, %v453
        %v478 = vpack.c.b16 %v458, %v456
        %v479 = vpack.c.b16 %v459, %v457
        %v480 = vpack.c.b16 %v462, %v460
        %v481 = vpack.c.b16 %v463, %v461
        %v482 = vpack.c.b16 %v466, %v464
        %v483 = vpack.c.b16 %v467, %v465
        %500 = vmatprep.subr.bf16.mxu0 %v469
        %501 = vmatpush1.bf16.msra.mxu0 %v468
        %502 = vmatprep.subr.bf16.mxu0 %v471
        %503 = vmatpush1.bf16.msra.mxu0 %v470
        %504 = vmatprep.subr.bf16.mxu0 %v473
        %505 = vmatpush1.bf16.msra.mxu0 %v472
        %506 = vmatprep.subr.bf16.mxu0 %v475
        %507 = vmatpush1.bf16.msra.mxu0 %v474
        %508 = vmatprep.subr.bf16.mxu0 %v477
        %509 = vmatpush1.bf16.msra.mxu0 %v476
        %510 = vmatprep.subr.bf16.mxu0 %v479
        %511 = vmatpush1.bf16.msra.mxu0 %v478
        %512 = vmatprep.subr.bf16.mxu0 %v481
        %513 = vmatpush1.bf16.msra.mxu0 %v480
        %514 = vmatprep.subr.bf16.mxu0 %v483
        %515 = vmatpush1.bf16.msra.mxu0 %v482
        %516 = vmatprep.subr.bf16.mxu0 0
        %517 = vmatpush1.bf16.msra.mxu0 0
        %518 = vmatprep.subr.bf16.mxu0 0
        %519 = vmatpush1.bf16.msra.mxu0 0
        %520 = vmatprep.subr.bf16.mxu0 0
        %521 = vmatpush1.bf16.msra.mxu0 0
        %522 = vmatprep.subr.bf16.mxu0 0
        %523 = vmatpush1.bf16.msra.mxu0 0
        %524 = vmatprep.subr.bf16.mxu0 0
        %525 = vmatpush1.bf16.msra.mxu0 0
        %526 = vmatprep.subr.bf16.mxu0 0
        %527 = vmatpush1.bf16.msra.mxu0 0
        %528 = vmatprep.subr.bf16.mxu0 0
        %529 = vmatpush1.bf16.msra.mxu0 0
        %530 = vmatprep.subr.bf16.mxu0 0
        %531 = vmatpush1.bf16.msra.mxu0 0
        %532 = vmatprep.mubr.bf16.mxu0 0
        %533 = vmatmul.mubr.bf16.gmra.mrb[0].mxu0 %v390
        %v534 = vpop.f32.mrb[0].mxu0
        %v535 = vadd.f32 %v413, %v534
        %v536 = vpop.f32.mrb[0].mxu0
        %v537 = vadd.f32 %v417, %v536
        %v538 = vpop.f32.mrb[0].mxu0
        %v539 = vpop.f32.mrb[0].mxu0
        %540 = vdwg.mxu0
        %v541 = vld [vmem:[#allocation9 + $0x8] sm:$0xff]
        %v542 = vld [vmem:[#allocation9 + $0x10] sm:$0xff]
        %v543 = vld [vmem:[#allocation9 + $0x20] sm:$0xff]
        %v544 = vld [vmem:[#allocation9 + $0x28] sm:$0xff]
        %v545 = vld [vmem:[#allocation9 + $0x38] sm:$0xff]
        %v546 = vld [vmem:[#allocation9 + $0x40] sm:$0xff]
        %v547 = vld [vmem:[#allocation9 + $0x50] sm:$0xff]
        %v548 = vld [vmem:[#allocation9 + $0x58] sm:$0xff]
        %v549 = vld [vmem:[#allocation9 + $0x68] sm:$0xff]
        %v550 = vld [vmem:[#allocation9 + $0x70] sm:$0xff]
        %v551 = vld [vmem:[#allocation9 + $0x80] sm:$0xff]
        %v552 = vld [vmem:[#allocation9 + $0x88] sm:$0xff]
        %v553 = vld [vmem:[#allocation9 + $0x98] sm:$0xff]
        %v554 = vld [vmem:[#allocation9 + $0xa0] sm:$0xff]
        %v555 = vld [vmem:[#allocation9 + $0xb0] sm:$0xff]
        %v556 = vld [vmem:[#allocation9 + $0xb8] sm:$0xff]
        %v557 = vld [vmem:[#allocation9 + $0xc8] sm:$0xff]
        %v558 = vld [vmem:[#allocation9 + $0xd0] sm:$0xff]
        %v559 = vld [vmem:[#allocation9 + $0xe0] sm:$0xff]
        %v560 = vld [vmem:[#allocation9 + $0xe8] sm:$0xff]
        %v561 = vld [vmem:[#allocation9 + $0xf8] sm:$0xff]
        %v562 = vld [vmem:[#allocation9 + $0x100] sm:$0xff]
        %v563 = vld [vmem:[#allocation9 + $0x110] sm:$0xff]
        %v564 = vld [vmem:[#allocation9 + $0x118] sm:$0xff]
        %v565 = vld [vmem:[#allocation9 + $0x128] sm:$0xff]
        %v566 = vld [vmem:[#allocation9 + $0x130] sm:$0xff]
        %v567 = vld [vmem:[#allocation9 + $0x140] sm:$0xff]
        %v568 = vld [vmem:[#allocation9 + $0x148] sm:$0xff]
        %v569 = vld [vmem:[#allocation9 + $0x158] sm:$0xff]
        %v570 = vld [vmem:[#allocation9 + $0x160] sm:$0xff]
        %v571 = vld [vmem:[#allocation9 + $0x170] sm:$0xff]
        %v572 = vld [vmem:[#allocation9 + $0x178] sm:$0xff]
        %v573 = vld [vmem:[%s5 + $0x2] sm:$0xf]
        %v575 = vlaneseq
        %v576 = vshrl.u32 %v575, 7
        %v577 = vsub.s32 0, %v576
        %v578 = vrot.slane %v573, %v577
        %v579 = vlaneseq
        %v580 = vshrl.u32 %v579, 7
        %v581 = vsub.s32 1, %v580
        %v582 = vrot.slane %v573, %v581
        %v583 = vlaneseq
        %v584 = vshrl.u32 %v583, 7
        %v585 = vsub.s32 2, %v584
        %v586 = vrot.slane %v573, %v585
        %v587 = vlaneseq
        %v588 = vshrl.u32 %v587, 7
        %v589 = vsub.s32 3, %v588
        %v590 = vrot.slane %v573, %v589
        %v627 = vunpack.c.l.b16 %v541
        %v628 = vunpack.c.h.b16 %v541
        %v629 = vunpack.c.l.b16 %v542
        %v630 = vunpack.c.h.b16 %v542
        %v631 = vunpack.c.l.b16 %v543
        %v632 = vunpack.c.h.b16 %v543
        %v633 = vunpack.c.l.b16 %v544
        %v634 = vunpack.c.h.b16 %v544
        %v635 = vunpack.c.l.b16 %v545
        %v636 = vunpack.c.h.b16 %v545
        %v637 = vunpack.c.l.b16 %v546
        %v638 = vunpack.c.h.b16 %v546
        %v639 = vunpack.c.l.b16 %v547
        %v640 = vunpack.c.h.b16 %v547
        %v641 = vunpack.c.l.b16 %v548
        %v642 = vunpack.c.h.b16 %v548
        %v643 = vunpack.c.l.b16 %v549
        %v644 = vunpack.c.h.b16 %v549
        %v645 = vunpack.c.l.b16 %v550
        %v646 = vunpack.c.h.b16 %v550
        %v647 = vunpack.c.l.b16 %v551
        %v648 = vunpack.c.h.b16 %v551
        %v649 = vunpack.c.l.b16 %v552
        %v650 = vunpack.c.h.b16 %v552
        %v651 = vunpack.c.l.b16 %v553
        %v652 = vunpack.c.h.b16 %v553
        %v653 = vunpack.c.l.b16 %v554
        %v654 = vunpack.c.h.b16 %v554
        %v655 = vunpack.c.l.b16 %v555
        %v656 = vunpack.c.h.b16 %v555
        %v657 = vunpack.c.l.b16 %v556
        %v658 = vunpack.c.h.b16 %v556
        %v659 = vunpack.c.l.b16 %v557
        %v660 = vunpack.c.h.b16 %v557
        %v661 = vunpack.c.l.b16 %v558
        %v662 = vunpack.c.h.b16 %v558
        %v663 = vunpack.c.l.b16 %v559
        %v664 = vunpack.c.h.b16 %v559
        %v665 = vunpack.c.l.b16 %v560
        %v666 = vunpack.c.h.b16 %v560
        %v667 = vunpack.c.l.b16 %v561
        %v668 = vunpack.c.h.b16 %v561
        %v669 = vunpack.c.l.b16 %v562
        %v670 = vunpack.c.h.b16 %v562
        %v671 = vunpack.c.l.b16 %v563
        %v672 = vunpack.c.h.b16 %v563
        %v673 = vunpack.c.l.b16 %v564
        %v674 = vunpack.c.h.b16 %v564
        %v675 = vunpack.c.l.b16 %v565
        %v676 = vunpack.c.h.b16 %v565
        %v677 = vunpack.c.l.b16 %v566
        %v678 = vunpack.c.h.b16 %v566
        %v679 = vunpack.c.l.b16 %v567
        %v680 = vunpack.c.h.b16 %v567
        %v681 = vunpack.c.l.b16 %v568
        %v682 = vunpack.c.h.b16 %v568
        %v683 = vunpack.c.l.b16 %v569
        %v684 = vunpack.c.h.b16 %v569
        %v685 = vunpack.c.l.b16 %v570
        %v686 = vunpack.c.h.b16 %v570
        %v687 = vunpack.c.l.b16 %v571
        %v688 = vunpack.c.h.b16 %v571
        %v689 = vunpack.c.l.b16 %v572
        %v690 = vunpack.c.h.b16 %v572
        %v691 = vpack.c.b16 %v631, %v627
        %v692 = vpack.c.b16 %v632, %v628
        %v693 = vpack.c.b16 %v633, %v629
        %v694 = vpack.c.b16 %v634, %v630
        %v695 = vpack.c.b16 %v639, %v635
        %v696 = vpack.c.b16 %v640, %v636
        %v697 = vpack.c.b16 %v641, %v637
        %v698 = vpack.c.b16 %v642, %v638
        %v699 = vpack.c.b16 %v647, %v643
        %v700 = vpack.c.b16 %v648, %v644
        %v701 = vpack.c.b16 %v649, %v645
        %v702 = vpack.c.b16 %v650, %v646
        %v703 = vpack.c.b16 %v655, %v651
        %v704 = vpack.c.b16 %v656, %v652
        %v705 = vpack.c.b16 %v657, %v653
        %v706 = vpack.c.b16 %v658, %v654
        %v707 = vpack.c.b16 %v663, %v659
        %v708 = vpack.c.b16 %v664, %v660
        %v709 = vpack.c.b16 %v665, %v661
        %v710 = vpack.c.b16 %v666, %v662
        %v711 = vpack.c.b16 %v671, %v667
        %v712 = vpack.c.b16 %v672, %v668
        %v713 = vpack.c.b16 %v673, %v669
        %v714 = vpack.c.b16 %v674, %v670
        %v715 = vpack.c.b16 %v679, %v675
        %v716 = vpack.c.b16 %v680, %v676
        %v717 = vpack.c.b16 %v681, %v677
        %v718 = vpack.c.b16 %v682, %v678
        %v719 = vpack.c.b16 %v687, %v683
        %v720 = vpack.c.b16 %v688, %v684
        %v721 = vpack.c.b16 %v689, %v685
        %v722 = vpack.c.b16 %v690, %v686
        %755 = vmatprep.subr.bf16.mxu0 %v692
        %756 = vmatpush1.bf16.msra.mxu0 %v691
        %757 = vmatprep.subr.bf16.mxu0 %v696
        %758 = vmatpush1.bf16.msra.mxu0 %v695
        %759 = vmatprep.subr.bf16.mxu0 %v700
        %760 = vmatpush1.bf16.msra.mxu0 %v699
        %761 = vmatprep.subr.bf16.mxu0 %v704
        %762 = vmatpush1.bf16.msra.mxu0 %v703
        %763 = vmatprep.subr.bf16.mxu0 %v708
        %764 = vmatpush1.bf16.msra.mxu0 %v707
        %765 = vmatprep.subr.bf16.mxu0 %v712
        %766 = vmatpush1.bf16.msra.mxu0 %v711
        %767 = vmatprep.subr.bf16.mxu0 %v716
        %768 = vmatpush1.bf16.msra.mxu0 %v715
        %769 = vmatprep.subr.bf16.mxu0 %v720
        %770 = vmatpush1.bf16.msra.mxu0 %v719
        %771 = vmatprep.subr.bf16.mxu0 0
        %772 = vmatpush1.bf16.msra.mxu0 0
        %773 = vmatprep.subr.bf16.mxu0 0
        %774 = vmatpush1.bf16.msra.mxu0 0
        %775 = vmatprep.subr.bf16.mxu0 0
        %776 = vmatpush1.bf16.msra.mxu0 0
        %777 = vmatprep.subr.bf16.mxu0 0
        %778 = vmatpush1.bf16.msra.mxu0 0
        %779 = vmatprep.subr.bf16.mxu0 0
        %780 = vmatpush1.bf16.msra.mxu0 0
        %781 = vmatprep.subr.bf16.mxu0 0
        %782 = vmatpush1.bf16.msra.mxu0 0
        %783 = vmatprep.subr.bf16.mxu0 0
        %784 = vmatpush1.bf16.msra.mxu0 0
        %785 = vmatprep.subr.bf16.mxu0 0
        %786 = vmatpush1.bf16.msra.mxu0 0
        %787 = vmatprep.mubr.bf16.mxu0 0
        %788 = vmatmul.mubr.bf16.gmra.mrb[0].mxu0 %v391
        %v789 = vpop.f32.mrb[0].mxu0
        %v790 = vadd.f32 %v578, %v789
        %v791 = vpop.f32.mrb[0].mxu0
        %v792 = vadd.f32 %v582, %v791
        %v793 = vpop.f32.mrb[0].mxu0
        %v794 = vpop.f32.mrb[0].mxu0
        %795 = vdwg.mxu0
        %796 = vmatprep.subr.bf16.mxu0 %v694
        %797 = vmatpush1.bf16.msra.mxu0 %v693
        %798 = vmatprep.subr.bf16.mxu0 %v698
        %799 = vmatpush1.bf16.msra.mxu0 %v697
        %800 = vmatprep.subr.bf16.mxu0 %v702
        %801 = vmatpush1.bf16.msra.mxu0 %v701
        %802 = vmatprep.subr.bf16.mxu0 %v706
        %803 = vmatpush1.bf16.msra.mxu0 %v705
        %804 = vmatprep.subr.bf16.mxu0 %v710
        %805 = vmatpush1.bf16.msra.mxu0 %v709
        %806 = vmatprep.subr.bf16.mxu0 %v714
        %807 = vmatpush1.bf16.msra.mxu0 %v713
        %808 = vmatprep.subr.bf16.mxu0 %v718
        %809 = vmatpush1.bf16.msra.mxu0 %v717
        %810 = vmatprep.subr.bf16.mxu0 %v722
        %811 = vmatpush1.bf16.msra.mxu0 %v721
        %812 = vmatprep.subr.bf16.mxu0 0
        %813 = vmatpush1.bf16.msra.mxu0 0
        %814 = vmatprep.subr.bf16.mxu0 0
        %815 = vmatpush1.bf16.msra.mxu0 0
        %816 = vmatprep.subr.bf16.mxu0 0
        %817 = vmatpush1.bf16.msra.mxu0 0
        %818 = vmatprep.subr.bf16.mxu0 0
        %819 = vmatpush1.bf16.msra.mxu0 0
        %820 = vmatprep.subr.bf16.mxu0 0
        %821 = vmatpush1.bf16.msra.mxu0 0
        %822 = vmatprep.subr.bf16.mxu0 0
        %823 = vmatpush1.bf16.msra.mxu0 0
        %824 = vmatprep.subr.bf16.mxu0 0
        %825 = vmatpush1.bf16.msra.mxu0 0
        %826 = vmatprep.subr.bf16.mxu0 0
        %827 = vmatpush1.bf16.msra.mxu0 0
        %828 = vmatprep.mubr.bf16.mxu0 0
        %829 = vmatmul.mubr.bf16.gmra.mrb[0].mxu0 %v391
        %v830 = vpop.f32.mrb[0].mxu0
        %v831 = vadd.f32 %v586, %v830
        %v832 = vpop.f32.mrb[0].mxu0
        %v833 = vadd.f32 %v590, %v832
        %v834 = vpop.f32.mrb[0].mxu0
        %v835 = vpop.f32.mrb[0].mxu0
        %836 = vdwg.mxu0
        %838 = vrot.lane.b32.xlu0 %v535, 96
        %v839 = vpop.permute.xlu0 %838
        %841 = vrot.lane.b32.xlu0 %v535, 64
        %v842 = vpop.permute.xlu0 %841
        %844 = vrot.lane.b32.xlu0 %v535, 32
        %v845 = vpop.permute.xlu0 %844
        %848 = vrot.lane.b32.xlu0 %v537, 96
        %v849 = vpop.permute.xlu0 %848
        %851 = vrot.lane.b32.xlu0 %v537, 64
        %v852 = vpop.permute.xlu0 %851
        %854 = vrot.lane.b32.xlu0 %v537, 32
        %v855 = vpop.permute.xlu0 %854
        %v857 = vpack.c.bf16 %v535, %v535
        %v858 = vpack.c.bf16 %v839, %v839
        %v859 = vpack.c.bf16 %v842, %v842
        %v860 = vpack.c.bf16 %v845, %v845
        %v861 = vpack.c.bf16 %v537, %v537
        %v862 = vpack.c.bf16 %v849, %v849
        %v863 = vpack.c.bf16 %v852, %v852
        %v864 = vpack.c.bf16 %v855, %v855
        %866 = vrot.lane.b32.xlu0 %v790, 96
        %v867 = vpop.permute.xlu0 %866
        %869 = vrot.lane.b32.xlu0 %v790, 64
        %v870 = vpop.permute.xlu0 %869
        %872 = vrot.lane.b32.xlu0 %v790, 32
        %v873 = vpop.permute.xlu0 %872
        %876 = vrot.lane.b32.xlu0 %v792, 96
        %v877 = vpop.permute.xlu0 %876
        %879 = vrot.lane.b32.xlu0 %v792, 64
        %v880 = vpop.permute.xlu0 %879
        %882 = vrot.lane.b32.xlu0 %v792, 32
        %v883 = vpop.permute.xlu0 %882
        %v885 = vpack.c.bf16 %v790, %v790
        %v886 = vpack.c.bf16 %v867, %v867
        %v887 = vpack.c.bf16 %v870, %v870
        %v888 = vpack.c.bf16 %v873, %v873
        %v889 = vpack.c.bf16 %v792, %v792
        %v890 = vpack.c.bf16 %v877, %v877
        %v891 = vpack.c.bf16 %v880, %v880
        %v892 = vpack.c.bf16 %v883, %v883
        %894 = vrot.lane.b32.xlu0 %v831, 96
        %v895 = vpop.permute.xlu0 %894
        %897 = vrot.lane.b32.xlu0 %v831, 64
        %v898 = vpop.permute.xlu0 %897
        %900 = vrot.lane.b32.xlu0 %v831, 32
        %v901 = vpop.permute.xlu0 %900
        %904 = vrot.lane.b32.xlu0 %v833, 96
        %v905 = vpop.permute.xlu0 %904
        %907 = vrot.lane.b32.xlu0 %v833, 64
        %v908 = vpop.permute.xlu0 %907
        %910 = vrot.lane.b32.xlu0 %v833, 32
        %v911 = vpop.permute.xlu0 %910
        %v913 = vpack.c.bf16 %v831, %v831
        %v914 = vpack.c.bf16 %v895, %v895
        %v915 = vpack.c.bf16 %v898, %v898
        %v916 = vpack.c.bf16 %v901, %v901
        %v917 = vpack.c.bf16 %v833, %v833
        %v918 = vpack.c.bf16 %v905, %v905
        %v919 = vpack.c.bf16 %v908, %v908
        %v920 = vpack.c.bf16 %v911, %v911
        %vm921 = vcmask 261120
        %v923 = vsel %vm921, %v857, 0
        %v926 = vsel %vm921, %v885, 0
        %928 = vmatprep.subr.bf16.mxu0 0
        %929 = vmatpush1.bf16.xpose.msra.mxu0 %v926
        %930 = vmatprep.subr.bf16.mxu0 0
        %931 = vmatpush1.bf16.xpose.msra.mxu0 0
        %932 = vmatprep.subr.bf16.mxu0 0
        %933 = vmatpush1.bf16.xpose.msra.mxu0 0
        %934 = vmatprep.subr.bf16.mxu0 0
        %935 = vmatpush1.bf16.xpose.msra.mxu0 0
        %936 = vmatprep.subr.bf16.mxu0 0
        %937 = vmatpush1.bf16.xpose.msra.mxu0 0
        %938 = vmatprep.subr.bf16.mxu0 0
        %939 = vmatpush1.bf16.xpose.msra.mxu0 0
        %940 = vmatprep.subr.bf16.mxu0 0
        %941 = vmatpush1.bf16.xpose.msra.mxu0 0
        %942 = vmatprep.subr.bf16.mxu0 0
        %943 = vmatpush1.bf16.xpose.msra.mxu0 0
        %944 = vmatprep.subr.bf16.mxu0 0
        %945 = vmatpush1.bf16.xpose.msra.mxu0 0
        %946 = vmatprep.subr.bf16.mxu0 0
        %947 = vmatpush1.bf16.xpose.msra.mxu0 0
        %948 = vmatprep.subr.bf16.mxu0 0
        %949 = vmatpush1.bf16.xpose.msra.mxu0 0
        %950 = vmatprep.subr.bf16.mxu0 0
        %951 = vmatpush1.bf16.xpose.msra.mxu0 0
        %952 = vmatprep.subr.bf16.mxu0 0
        %953 = vmatpush1.bf16.xpose.msra.mxu0 0
        %954 = vmatprep.subr.bf16.mxu0 0
        %955 = vmatpush1.bf16.xpose.msra.mxu0 0
        %956 = vmatprep.subr.bf16.mxu0 0
        %957 = vmatpush1.bf16.xpose.msra.mxu0 0
        %958 = vmatprep.subr.bf16.mxu0 0
        %959 = vmatpush1.bf16.xpose.msra.mxu0 0
        %960 = vmatprep.mubr.bf16.mxu0 0
        %961 = vmatmul.mubr.bf16.gmra.mrb[0].mxu0 %v923
        %v962 = vpop.f32.mrb[0].mxu0
        %v963 = vadd.f32 %v389, %v962
        %v964 = vpop.f32.mrb[0].mxu0
        %v965 = vpop.f32.mrb[0].mxu0
        %v966 = vpop.f32.mrb[0].mxu0
        %967 = vdwg.mxu0
        %v969 = vsel %vm921, %v858, 0
        %v972 = vsel %vm921, %v886, 0
        %974 = vmatprep.subr.bf16.mxu0 0
        %975 = vmatpush1.bf16.xpose.msra.mxu0 %v972
        %976 = vmatprep.subr.bf16.mxu0 0
        %977 = vmatpush1.bf16.xpose.msra.mxu0 0
        %978 = vmatprep.subr.bf16.mxu0 0
        %979 = vmatpush1.bf16.xpose.msra.mxu0 0
        %980 = vmatprep.subr.bf16.mxu0 0
        %981 = vmatpush1.bf16.xpose.msra.mxu0 0
        %982 = vmatprep.subr.bf16.mxu0 0
        %983 = vmatpush1.bf16.xpose.msra.mxu0 0
        %984 = vmatprep.subr.bf16.mxu0 0
        %985 = vmatpush1.bf16.xpose.msra.mxu0 0
        %986 = vmatprep.subr.bf16.mxu0 0
        %987 = vmatpush1.bf16.xpose.msra.mxu0 0
        %988 = vmatprep.subr.bf16.mxu0 0
        %989 = vmatpush1.bf16.xpose.msra.mxu0 0
        %990 = vmatprep.subr.bf16.mxu0 0
        %991 = vmatpush1.bf16.xpose.msra.mxu0 0
        %992 = vmatprep.subr.bf16.mxu0 0
        %993 = vmatpush1.bf16.xpose.msra.mxu0 0
        %994 = vmatprep.subr.bf16.mxu0 0
        %995 = vmatpush1.bf16.xpose.msra.mxu0 0
        %996 = vmatprep.subr.bf16.mxu0 0
        %997 = vmatpush1.bf16.xpose.msra.mxu0 0
        %998 = vmatprep.subr.bf16.mxu0 0
        %999 = vmatpush1.bf16.xpose.msra.mxu0 0
        %1000 = vmatprep.subr.bf16.mxu0 0
        %1001 = vmatpush1.bf16.xpose.msra.mxu0 0
        %1002 = vmatprep.subr.bf16.mxu0 0
        %1003 = vmatpush1.bf16.xpose.msra.mxu0 0
        %1004 = vmatprep.subr.bf16.mxu0 0
        %1005 = vmatpush1.bf16.xpose.msra.mxu0 0
        %1006 = vmatprep.mubr.bf16.mxu0 0
        %1007 = vmatmul.mubr.bf16.gmra.mrb[0].mxu0 %v969
        %v1008 = vpop.f32.mrb[0].mxu0
        %v1009 = vadd.f32 %v389, %v1008
        %v1010 = vpop.f32.mrb[0].mxu0
        %v1011 = vpop.f32.mrb[0].mxu0
        %v1012 = vpop.f32.mrb[0].mxu0
        %1013 = vdwg.mxu0
        %v1015 = vsel %vm921, %v859, 0
        %v1018 = vsel %vm921, %v887, 0
        %1020 = vmatprep.subr.bf16.mxu0 0
        %1021 = vmatpush1.bf16.xpose.msra.mxu0 %v1018
        %1022 = vmatprep.subr.bf16.mxu0 0
        %1023 = vmatpush1.bf16.xpose.msra.mxu0 0
        %1024 = vmatprep.subr.bf16.mxu0 0
        %1025 = vmatpush1.bf16.xpose.msra.mxu0 0
        %1026 = vmatprep.subr.bf16.mxu0 0
        %1027 = vmatpush1.bf16.xpose.msra.mxu0 0
        %1028 = vmatprep.subr.bf16.mxu0 0
        %1029 = vmatpush1.bf16.xpose.msra.mxu0 0
        %1030 = vmatprep.subr.bf16.mxu0 0
        %1031 = vmatpush1.bf16.xpose.msra.mxu0 0
        %1032 = vmatprep.subr.bf16.mxu0 0
        %1033 = vmatpush1.bf16.xpose.msra.mxu0 0
        %1034 = vmatprep.subr.bf16.mxu0 0
        %1035 = vmatpush1.bf16.xpose.msra.mxu0 0
        %1036 = vmatprep.subr.bf16.mxu0 0
        %1037 = vmatpush1.bf16.xpose.msra.mxu0 0
        %1038 = vmatprep.subr.bf16.mxu0 0
        %1039 = vmatpush1.bf16.xpose.msra.mxu0 0
        %1040 = vmatprep.subr.bf16.mxu0 0
        %1041 = vmatpush1.bf16.xpose.msra.mxu0 0
        %1042 = vmatprep.subr.bf16.mxu0 0
        %1043 = vmatpush1.bf16.xpose.msra.mxu0 0
        %1044 = vmatprep.subr.bf16.mxu0 0
        %1045 = vmatpush1.bf16.xpose.msra.mxu0 0
        %1046 = vmatprep.subr.bf16.mxu0 0
        %1047 = vmatpush1.bf16.xpose.msra.mxu0 0
        %1048 = vmatprep.subr.bf16.mxu0 0
        %1049 = vmatpush1.bf16.xpose.msra.mxu0 0
        %1050 = vmatprep.subr.bf16.mxu0 0
        %1051 = vmatpush1.bf16.xpose.msra.mxu0 0
        %1052 = vmatprep.mubr.bf16.mxu0 0
        %1053 = vmatmul.mubr.bf16.gmra.mrb[0].mxu0 %v1015
        %v1054 = vpop.f32.mrb[0].mxu0
        %v1055 = vadd.f32 %v389, %v1054
        %v1056 = vpop.f32.mrb[0].mxu0
        %v1057 = vpop.f32.mrb[0].mxu0
        %v1058 = vpop.f32.mrb[0].mxu0
        %1059 = vdwg.mxu0
        %v1061 = vsel %vm921, %v860, 0
        %v1064 = vsel %vm921, %v888, 0
        %1066 = vmatprep.subr.bf16.mxu0 0
        %1067 = vmatpush1.bf16.xpose.msra.mxu0 %v1064
        %1068 = vmatprep.subr.bf16.mxu0 0
        %1069 = vmatpush1.bf16.xpose.msra.mxu0 0
        %1070 = vmatprep.subr.bf16.mxu0 0
        %1071 = vmatpush1.bf16.xpose.msra.mxu0 0
        %1072 = vmatprep.subr.bf16.mxu0 0
        %1073 = vmatpush1.bf16.xpose.msra.mxu0 0
        %1074 = vmatprep.subr.bf16.mxu0 0
        %1075 = vmatpush1.bf16.xpose.msra.mxu0 0
        %1076 = vmatprep.subr.bf16.mxu0 0
        %1077 = vmatpush1.bf16.xpose.msra.mxu0 0
        %1078 = vmatprep.subr.bf16.mxu0 0
        %1079 = vmatpush1.bf16.xpose.msra.mxu0 0
        %1080 = vmatprep.subr.bf16.mxu0 0
        %1081 = vmatpush1.bf16.xpose.msra.mxu0 0
        %1082 = vmatprep.subr.bf16.mxu0 0
        %1083 = vmatpush1.bf16.xpose.msra.mxu0 0
        %1084 = vmatprep.subr.bf16.mxu0 0
        %1085 = vmatpush1.bf16.xpose.msra.mxu0 0
        %1086 = vmatprep.subr.bf16.mxu0 0
        %1087 = vmatpush1.bf16.xpose.msra.mxu0 0
        %1088 = vmatprep.subr.bf16.mxu0 0
        %1089 = vmatpush1.bf16.xpose.msra.mxu0 0
        %1090 = vmatprep.subr.bf16.mxu0 0
        %1091 = vmatpush1.bf16.xpose.msra.mxu0 0
        %1092 = vmatprep.subr.bf16.mxu0 0
        %1093 = vmatpush1.bf16.xpose.msra.mxu0 0
        %1094 = vmatprep.subr.bf16.mxu0 0
        %1095 = vmatpush1.bf16.xpose.msra.mxu0 0
        %1096 = vmatprep.subr.bf16.mxu0 0
        %1097 = vmatpush1.bf16.xpose.msra.mxu0 0
        %1098 = vmatprep.mubr.bf16.mxu0 0
        %1099 = vmatmul.mubr.bf16.gmra.mrb[0].mxu0 %v1061
        %v1100 = vpop.f32.mrb[0].mxu0
        %v1101 = vadd.f32 %v389, %v1100
        %v1102 = vpop.f32.mrb[0].mxu0
        %v1103 = vpop.f32.mrb[0].mxu0
        %v1104 = vpop.f32.mrb[0].mxu0
        %1105 = vdwg.mxu0
        %v1107 = vsel %vm921, %v861, 0
        %v1110 = vsel %vm921, %v889, 0
        %1112 = vmatprep.subr.bf16.mxu0 0
        %1113 = vmatpush1.bf16.xpose.msra.mxu0 %v1110
        %1114 = vmatprep.subr.bf16.mxu0 0
        %1115 = vmatpush1.bf16.xpose.msra.mxu0 0
        %1116 = vmatprep.subr.bf16.mxu0 0
        %1117 = vmatpush1.bf16.xpose.msra.mxu0 0
        %1118 = vmatprep.subr.bf16.mxu0 0
        %1119 = vmatpush1.bf16.xpose.msra.mxu0 0
        %1120 = vmatprep.subr.bf16.mxu0 0
        %1121 = vmatpush1.bf16.xpose.msra.mxu0 0
        %1122 = vmatprep.subr.bf16.mxu0 0
        %1123 = vmatpush1.bf16.xpose.msra.mxu0 0
        %1124 = vmatprep.subr.bf16.mxu0 0
        %1125 = vmatpush1.bf16.xpose.msra.mxu0 0
        %1126 = vmatprep.subr.bf16.mxu0 0
        %1127 = vmatpush1.bf16.xpose.msra.mxu0 0
        %1128 = vmatprep.subr.bf16.mxu0 0
        %1129 = vmatpush1.bf16.xpose.msra.mxu0 0
        %1130 = vmatprep.subr.bf16.mxu0 0
        %1131 = vmatpush1.bf16.xpose.msra.mxu0 0
        %1132 = vmatprep.subr.bf16.mxu0 0
        %1133 = vmatpush1.bf16.xpose.msra.mxu0 0
        %1134 = vmatprep.subr.bf16.mxu0 0
        %1135 = vmatpush1.bf16.xpose.msra.mxu0 0
        %1136 = vmatprep.subr.bf16.mxu0 0
        %1137 = vmatpush1.bf16.xpose.msra.mxu0 0
        %1138 = vmatprep.subr.bf16.mxu0 0
        %1139 = vmatpush1.bf16.xpose.msra.mxu0 0
        %1140 = vmatprep.subr.bf16.mxu0 0
        %1141 = vmatpush1.bf16.xpose.msra.mxu0 0
        %1142 = vmatprep.subr.bf16.mxu0 0
        %1143 = vmatpush1.bf16.xpose.msra.mxu0 0
        %1144 = vmatprep.mubr.bf16.mxu0 0
        %1145 = vmatmul.mubr.bf16.gmra.mrb[0].mxu0 %v1107
        %v1146 = vpop.f32.mrb[0].mxu0
        %v1147 = vadd.f32 %v389, %v1146
        %v1148 = vpop.f32.mrb[0].mxu0
        %v1149 = vpop.f32.mrb[0].mxu0
        %v1150 = vpop.f32.mrb[0].mxu0
        %1151 = vdwg.mxu0
        %v1153 = vsel %vm921, %v862, 0
        %v1156 = vsel %vm921, %v890, 0
        %1158 = vmatprep.subr.bf16.mxu0 0
        %1159 = vmatpush1.bf16.xpose.msra.mxu0 %v1156
        %1160 = vmatprep.subr.bf16.mxu0 0
        %1161 = vmatpush1.bf16.xpose.msra.mxu0 0
        %1162 = vmatprep.subr.bf16.mxu0 0
        %1163 = vmatpush1.bf16.xpose.msra.mxu0 0
        %1164 = vmatprep.subr.bf16.mxu0 0
        %1165 = vmatpush1.bf16.xpose.msra.mxu0 0
        %1166 = vmatprep.subr.bf16.mxu0 0
        %1167 = vmatpush1.bf16.xpose.msra.mxu0 0
        %1168 = vmatprep.subr.bf16.mxu0 0
        %1169 = vmatpush1.bf16.xpose.msra.mxu0 0
        %1170 = vmatprep.subr.bf16.mxu0 0
        %1171 = vmatpush1.bf16.xpose.msra.mxu0 0
        %1172 = vmatprep.subr.bf16.mxu0 0
        %1173 = vmatpush1.bf16.xpose.msra.mxu0 0
        %1174 = vmatprep.subr.bf16.mxu0 0
        %1175 = vmatpush1.bf16.xpose.msra.mxu0 0
        %1176 = vmatprep.subr.bf16.mxu0 0
        %1177 = vmatpush1.bf16.xpose.msra.mxu0 0
        %1178 = vmatprep.subr.bf16.mxu0 0
        %1179 = vmatpush1.bf16.xpose.msra.mxu0 0
        %1180 = vmatprep.subr.bf16.mxu0 0
        %1181 = vmatpush1.bf16.xpose.msra.mxu0 0
        %1182 = vmatprep.subr.bf16.mxu0 0
        %1183 = vmatpush1.bf16.xpose.msra.mxu0 0
        %1184 = vmatprep.subr.bf16.mxu0 0
        %1185 = vmatpush1.bf16.xpose.msra.mxu0 0
        %1186 = vmatprep.subr.bf16.mxu0 0
        %1187 = vmatpush1.bf16.xpose.msra.mxu0 0
        %1188 = vmatprep.subr.bf16.mxu0 0
        %1189 = vmatpush1.bf16.xpose.msra.mxu0 0
        %1190 = vmatprep.mubr.bf16.mxu0 0
        %1191 = vmatmul.mubr.bf16.gmra.mrb[0].mxu0 %v1153
        %v1192 = vpop.f32.mrb[0].mxu0
        %v1193 = vadd.f32 %v389, %v1192
        %v1194 = vpop.f32.mrb[0].mxu0
        %v1195 = vpop.f32.mrb[0].mxu0
        %v1196 = vpop.f32.mrb[0].mxu0
        %1197 = vdwg.mxu0
        %v1199 = vsel %vm921, %v863, 0
        %v1202 = vsel %vm921, %v891, 0
        %1204 = vmatprep.subr.bf16.mxu0 0
        %1205 = vmatpush1.bf16.xpose.msra.mxu0 %v1202
        %1206 = vmatprep.subr.bf16.mxu0 0
        %1207 = vmatpush1.bf16.xpose.msra.mxu0 0
        %1208 = vmatprep.subr.bf16.mxu0 0
        %1209 = vmatpush1.bf16.xpose.msra.mxu0 0
        %1210 = vmatprep.subr.bf16.mxu0 0
        %1211 = vmatpush1.bf16.xpose.msra.mxu0 0
        %1212 = vmatprep.subr.bf16.mxu0 0
        %1213 = vmatpush1.bf16.xpose.msra.mxu0 0
        %1214 = vmatprep.subr.bf16.mxu0 0
        %1215 = vmatpush1.bf16.xpose.msra.mxu0 0
        %1216 = vmatprep.subr.bf16.mxu0 0
        %1217 = vmatpush1.bf16.xpose.msra.mxu0 0
        %1218 = vmatprep.subr.bf16.mxu0 0
        %1219 = vmatpush1.bf16.xpose.msra.mxu0 0
        %1220 = vmatprep.subr.bf16.mxu0 0
        %1221 = vmatpush1.bf16.xpose.msra.mxu0 0
        %1222 = vmatprep.subr.bf16.mxu0 0
        %1223 = vmatpush1.bf16.xpose.msra.mxu0 0
        %1224 = vmatprep.subr.bf16.mxu0 0
        %1225 = vmatpush1.bf16.xpose.msra.mxu0 0
        %1226 = vmatprep.subr.bf16.mxu0 0
        %1227 = vmatpush1.bf16.xpose.msra.mxu0 0
        %1228 = vmatprep.subr.bf16.mxu0 0
        %1229 = vmatpush1.bf16.xpose.msra.mxu0 0
        %1230 = vmatprep.subr.bf16.mxu0 0
        %1231 = vmatpush1.bf16.xpose.msra.mxu0 0
        %1232 = vmatprep.subr.bf16.mxu0 0
        %1233 = vmatpush1.bf16.xpose.msra.mxu0 0
        %1234 = vmatprep.subr.bf16.mxu0 0
        %1235 = vmatpush1.bf16.xpose.msra.mxu0 0
        %1236 = vmatprep.mubr.bf16.mxu0 0
        %1237 = vmatmul.mubr.bf16.gmra.mrb[0].mxu0 %v1199
        %v1238 = vpop.f32.mrb[0].mxu0
        %v1239 = vadd.f32 %v389, %v1238
        %v1240 = vpop.f32.mrb[0].mxu0
        %v1241 = vpop.f32.mrb[0].mxu0
        %v1242 = vpop.f32.mrb[0].mxu0
        %1243 = vdwg.mxu0
        %v1245 = vsel %vm921, %v864, 0
        %v1248 = vsel %vm921, %v892, 0
        %1250 = vmatprep.subr.bf16.mxu0 0
        %1251 = vmatpush1.bf16.xpose.msra.mxu0 %v1248
        %1252 = vmatprep.subr.bf16.mxu0 0
        %1253 = vmatpush1.bf16.xpose.msra.mxu0 0
        %1254 = vmatprep.subr.bf16.mxu0 0
        %1255 = vmatpush1.bf16.xpose.msra.mxu0 0
        %1256 = vmatprep.subr.bf16.mxu0 0
        %1257 = vmatpush1.bf16.xpose.msra.mxu0 0
        %1258 = vmatprep.subr.bf16.mxu0 0
        %1259 = vmatpush1.bf16.xpose.msra.mxu0 0
        %1260 = vmatprep.subr.bf16.mxu0 0
        %1261 = vmatpush1.bf16.xpose.msra.mxu0 0
        %1262 = vmatprep.subr.bf16.mxu0 0
        %1263 = vmatpush1.bf16.xpose.msra.mxu0 0
        %1264 = vmatprep.subr.bf16.mxu0 0
        %1265 = vmatpush1.bf16.xpose.msra.mxu0 0
        %1266 = vmatprep.subr.bf16.mxu0 0
        %1267 = vmatpush1.bf16.xpose.msra.mxu0 0
        %1268 = vmatprep.subr.bf16.mxu0 0
        %1269 = vmatpush1.bf16.xpose.msra.mxu0 0
        %1270 = vmatprep.subr.bf16.mxu0 0
        %1271 = vmatpush1.bf16.xpose.msra.mxu0 0
        %1272 = vmatprep.subr.bf16.mxu0 0
        %1273 = vmatpush1.bf16.xpose.msra.mxu0 0
        %1274 = vmatprep.subr.bf16.mxu0 0
        %1275 = vmatpush1.bf16.xpose.msra.mxu0 0
        %1276 = vmatprep.subr.bf16.mxu0 0
        %1277 = vmatpush1.bf16.xpose.msra.mxu0 0
        %1278 = vmatprep.subr.bf16.mxu0 0
        %1279 = vmatpush1.bf16.xpose.msra.mxu0 0
        %1280 = vmatprep.subr.bf16.mxu0 0
        %1281 = vmatpush1.bf16.xpose.msra.mxu0 0
        %1282 = vmatprep.mubr.bf16.mxu0 0
        %1283 = vmatmul.mubr.bf16.gmra.mrb[0].mxu0 %v1245
        %v1284 = vpop.f32.mrb[0].mxu0
        %v1285 = vadd.f32 %v389, %v1284
        %v1286 = vpop.f32.mrb[0].mxu0
        %v1287 = vpop.f32.mrb[0].mxu0
        %v1288 = vpop.f32.mrb[0].mxu0
        %1289 = vdwg.mxu0
        %vm1290 = vcmask 64512
        %v1291 = vsel %vm1290, %v963, -inf
        %1292 = vmax.xlane.f32.xlu0 %v1291
        %v1293 = vpop.xlane.xlu0 %1292
        %v1294 = vsel %vm1290, %v1009, -inf
        %1295 = vmax.xlane.f32.xlu0 %v1294
        %v1296 = vpop.xlane.xlu0 %1295
        %v1297 = vsel %vm1290, %v1055, -inf
        %1298 = vmax.xlane.f32.xlu0 %v1297
        %v1299 = vpop.xlane.xlu0 %1298
        %v1300 = vsel %vm1290, %v1101, -inf
        %1301 = vmax.xlane.f32.xlu0 %v1300
        %v1302 = vpop.xlane.xlu0 %1301
        %v1303 = vsel %vm1290, %v1147, -inf
        %1304 = vmax.xlane.f32.xlu0 %v1303
        %v1305 = vpop.xlane.xlu0 %1304
        %v1306 = vsel %vm1290, %v1193, -inf
        %1307 = vmax.xlane.f32.xlu0 %v1306
        %v1308 = vpop.xlane.xlu0 %1307
        %v1309 = vsel %vm1290, %v1239, -inf
        %1310 = vmax.xlane.f32.xlu0 %v1309
        %v1311 = vpop.xlane.xlu0 %1310
        %v1312 = vsel %vm1290, %v1285, -inf
        %1313 = vmax.xlane.f32.xlu0 %v1312
        %v1314 = vpop.xlane.xlu0 %1313
        %v1315 = vsub.f32 %v963, %v1293
        %v1316 = vsub.f32 %v1009, %v1296
        %v1317 = vsub.f32 %v1055, %v1299
        %v1318 = vsub.f32 %v1101, %v1302
        %v1319 = vsub.f32 %v1147, %v1305
        %v1320 = vsub.f32 %v1193, %v1308
        %v1321 = vsub.f32 %v1239, %v1311
        %v1322 = vsub.f32 %v1285, %v1314
        %v1323 = vmul.f32 %v1315, 1.442695
        %v1324 = vpow.pop %v1323
        %v1325 = vmul.f32 %v1316, 1.442695
        %v1326 = vpow.pop %v1325
        %v1327 = vmul.f32 %v1317, 1.442695
        %v1328 = vpow.pop %v1327
        %v1329 = vmul.f32 %v1318, 1.442695
        %v1330 = vpow.pop %v1329
        %v1331 = vmul.f32 %v1319, 1.442695
        %v1332 = vpow.pop %v1331
        %v1333 = vmul.f32 %v1320, 1.442695
        %v1334 = vpow.pop %v1333
        %v1335 = vmul.f32 %v1321, 1.442695
        %v1336 = vpow.pop %v1335
        %v1337 = vmul.f32 %v1322, 1.442695
        %v1338 = vpow.pop %v1337
        %v1339 = vsel %vm1290, %v1324, 0.0
        %1340 = vadd.xlane.f32.xlu0 %v1339
        %v1341 = vpop.xlane.xlu0 %1340
        %v1342 = vsel %vm1290, %v1326, 0.0
        %1343 = vadd.xlane.f32.xlu0 %v1342
        %v1344 = vpop.xlane.xlu0 %1343
        %v1345 = vsel %vm1290, %v1328, 0.0
        %1346 = vadd.xlane.f32.xlu0 %v1345
        %v1347 = vpop.xlane.xlu0 %1346
        %v1348 = vsel %vm1290, %v1330, 0.0
        %1349 = vadd.xlane.f32.xlu0 %v1348
        %v1350 = vpop.xlane.xlu0 %1349
        %v1351 = vsel %vm1290, %v1332, 0.0
        %1352 = vadd.xlane.f32.xlu0 %v1351
        %v1353 = vpop.xlane.xlu0 %1352
        %v1354 = vsel %vm1290, %v1334, 0.0
        %1355 = vadd.xlane.f32.xlu0 %v1354
        %v1356 = vpop.xlane.xlu0 %1355
        %v1357 = vsel %vm1290, %v1336, 0.0
        %1358 = vadd.xlane.f32.xlu0 %v1357
        %v1359 = vpop.xlane.xlu0 %1358
        %v1360 = vsel %vm1290, %v1338, 0.0
        %1361 = vadd.xlane.f32.xlu0 %v1360
        %v1362 = vpop.xlane.xlu0 %1361
        %v1363 = vrcp.pop %v1341
        %v1364 = vmul.f32 %v1324, %v1363
        %v1365 = vrcp.pop %v1344
        %v1366 = vmul.f32 %v1326, %v1365
        %v1367 = vrcp.pop %v1347
        %v1368 = vmul.f32 %v1328, %v1367
        %v1369 = vrcp.pop %v1350
        %v1370 = vmul.f32 %v1330, %v1369
        %v1371 = vrcp.pop %v1353
        %v1372 = vmul.f32 %v1332, %v1371
        %v1373 = vrcp.pop %v1356
        %v1374 = vmul.f32 %v1334, %v1373
        %v1375 = vrcp.pop %v1359
        %v1376 = vmul.f32 %v1336, %v1375
        %v1377 = vrcp.pop %v1362
        %v1378 = vmul.f32 %v1338, %v1377
        %v1379 = vpack.c.bf16 %v1364, %v1364
        %v1380 = vpack.c.bf16 %v1366, %v1366
        %v1381 = vpack.c.bf16 %v1368, %v1368
        %v1382 = vpack.c.bf16 %v1370, %v1370
        %v1383 = vpack.c.bf16 %v1372, %v1372
        %v1384 = vpack.c.bf16 %v1374, %v1374
        %v1385 = vpack.c.bf16 %v1376, %v1376
        %v1386 = vpack.c.bf16 %v1378, %v1378
        %v1388 = vsel %vm1290, %v1379, 0
        %vm1390 = vcmask 1043456
        %v1392 = vsel %vm1390, %v913, 0
        %1394 = vmatprep.subr.bf16.mxu0 0
        %1395 = vmatpush1.bf16.msra.mxu0 %v1392
        %1396 = vmatprep.subr.bf16.mxu0 0
        %1397 = vmatpush1.bf16.msra.mxu0 0
        %1398 = vmatprep.subr.bf16.mxu0 0
        %1399 = vmatpush1.bf16.msra.mxu0 0
        %1400 = vmatprep.subr.bf16.mxu0 0
        %1401 = vmatpush1.bf16.msra.mxu0 0
        %1402 = vmatprep.subr.bf16.mxu0 0
        %1403 = vmatpush1.bf16.msra.mxu0 0
        %1404 = vmatprep.subr.bf16.mxu0 0
        %1405 = vmatpush1.bf16.msra.mxu0 0
        %1406 = vmatprep.subr.bf16.mxu0 0
        %1407 = vmatpush1.bf16.msra.mxu0 0
        %1408 = vmatprep.subr.bf16.mxu0 0
        %1409 = vmatpush1.bf16.msra.mxu0 0
        %1410 = vmatprep.subr.bf16.mxu0 0
        %1411 = vmatpush1.bf16.msra.mxu0 0
        %1412 = vmatprep.subr.bf16.mxu0 0
        %1413 = vmatpush1.bf16.msra.mxu0 0
        %1414 = vmatprep.subr.bf16.mxu0 0
        %1415 = vmatpush1.bf16.msra.mxu0 0
        %1416 = vmatprep.subr.bf16.mxu0 0
        %1417 = vmatpush1.bf16.msra.mxu0 0
        %1418 = vmatprep.subr.bf16.mxu0 0
        %1419 = vmatpush1.bf16.msra.mxu0 0
        %1420 = vmatprep.subr.bf16.mxu0 0
        %1421 = vmatpush1.bf16.msra.mxu0 0
        %1422 = vmatprep.subr.bf16.mxu0 0
        %1423 = vmatpush1.bf16.msra.mxu0 0
        %1424 = vmatprep.subr.bf16.mxu0 0
        %1425 = vmatpush1.bf16.msra.mxu0 0
        %1426 = vmatprep.mubr.bf16.mxu0 0
        %1427 = vmatmul.mubr.bf16.gmra.mrb[0].mxu0 %v1388
        %v1428 = vpop.f32.mrb[0].mxu0
        %v1429 = vadd.f32 0.0, %v1428
        %v1430 = vpop.f32.mrb[0].mxu0
        %v1431 = vpop.f32.mrb[0].mxu0
        %v1432 = vpop.f32.mrb[0].mxu0
        %1433 = vdwg.mxu0
        %v1435 = vsel %vm1290, %v1380, 0
        %v1438 = vsel %vm1390, %v914, 0
        %1440 = vmatprep.subr.bf16.mxu0 0
        %1441 = vmatpush1.bf16.msra.mxu0 %v1438
        %1442 = vmatprep.subr.bf16.mxu0 0
        %1443 = vmatpush1.bf16.msra.mxu0 0
        %1444 = vmatprep.subr.bf16.mxu0 0
        %1445 = vmatpush1.bf16.msra.mxu0 0
        %1446 = vmatprep.subr.bf16.mxu0 0
        %1447 = vmatpush1.bf16.msra.mxu0 0
        %1448 = vmatprep.subr.bf16.mxu0 0
        %1449 = vmatpush1.bf16.msra.mxu0 0
        %1450 = vmatprep.subr.bf16.mxu0 0
        %1451 = vmatpush1.bf16.msra.mxu0 0
        %1452 = vmatprep.subr.bf16.mxu0 0
        %1453 = vmatpush1.bf16.msra.mxu0 0
        %1454 = vmatprep.subr.bf16.mxu0 0
        %1455 = vmatpush1.bf16.msra.mxu0 0
        %1456 = vmatprep.subr.bf16.mxu0 0
        %1457 = vmatpush1.bf16.msra.mxu0 0
        %1458 = vmatprep.subr.bf16.mxu0 0
        %1459 = vmatpush1.bf16.msra.mxu0 0
        %1460 = vmatprep.subr.bf16.mxu0 0
        %1461 = vmatpush1.bf16.msra.mxu0 0
        %1462 = vmatprep.subr.bf16.mxu0 0
        %1463 = vmatpush1.bf16.msra.mxu0 0
        %1464 = vmatprep.subr.bf16.mxu0 0
        %1465 = vmatpush1.bf16.msra.mxu0 0
        %1466 = vmatprep.subr.bf16.mxu0 0
        %1467 = vmatpush1.bf16.msra.mxu0 0
        %1468 = vmatprep.subr.bf16.mxu0 0
        %1469 = vmatpush1.bf16.msra.mxu0 0
        %1470 = vmatprep.subr.bf16.mxu0 0
        %1471 = vmatpush1.bf16.msra.mxu0 0
        %1472 = vmatprep.mubr.bf16.mxu0 0
        %1473 = vmatmul.mubr.bf16.gmra.mrb[0].mxu0 %v1435
        %v1474 = vpop.f32.mrb[0].mxu0
        %v1475 = vadd.f32 0.0, %v1474
        %v1476 = vpop.f32.mrb[0].mxu0
        %v1477 = vpop.f32.mrb[0].mxu0
        %v1478 = vpop.f32.mrb[0].mxu0
        %1479 = vdwg.mxu0
        %v1481 = vsel %vm1290, %v1381, 0
        %v1484 = vsel %vm1390, %v915, 0
        %1486 = vmatprep.subr.bf16.mxu0 0
        %1487 = vmatpush1.bf16.msra.mxu0 %v1484
        %1488 = vmatprep.subr.bf16.mxu0 0
        %1489 = vmatpush1.bf16.msra.mxu0 0
        %1490 = vmatprep.subr.bf16.mxu0 0
        %1491 = vmatpush1.bf16.msra.mxu0 0
        %1492 = vmatprep.subr.bf16.mxu0 0
        %1493 = vmatpush1.bf16.msra.mxu0 0
        %1494 = vmatprep.subr.bf16.mxu0 0
        %1495 = vmatpush1.bf16.msra.mxu0 0
        %1496 = vmatprep.subr.bf16.mxu0 0
        %1497 = vmatpush1.bf16.msra.mxu0 0
        %1498 = vmatprep.subr.bf16.mxu0 0
        %1499 = vmatpush1.bf16.msra.mxu0 0
        %1500 = vmatprep.subr.bf16.mxu0 0
        %1501 = vmatpush1.bf16.msra.mxu0 0
        %1502 = vmatprep.subr.bf16.mxu0 0
        %1503 = vmatpush1.bf16.msra.mxu0 0
        %1504 = vmatprep.subr.bf16.mxu0 0
        %1505 = vmatpush1.bf16.msra.mxu0 0
        %1506 = vmatprep.subr.bf16.mxu0 0
        %1507 = vmatpush1.bf16.msra.mxu0 0
        %1508 = vmatprep.subr.bf16.mxu0 0
        %1509 = vmatpush1.bf16.msra.mxu0 0
        %1510 = vmatprep.subr.bf16.mxu0 0
        %1511 = vmatpush1.bf16.msra.mxu0 0
        %1512 = vmatprep.subr.bf16.mxu0 0
        %1513 = vmatpush1.bf16.msra.mxu0 0
        %1514 = vmatprep.subr.bf16.mxu0 0
        %1515 = vmatpush1.bf16.msra.mxu0 0
        %1516 = vmatprep.subr.bf16.mxu0 0
        %1517 = vmatpush1.bf16.msra.mxu0 0
        %1518 = vmatprep.mubr.bf16.mxu0 0
        %1519 = vmatmul.mubr.bf16.gmra.mrb[0].mxu0 %v1481
        %v1520 = vpop.f32.mrb[0].mxu0
        %v1521 = vadd.f32 0.0, %v1520
        %v1522 = vpop.f32.mrb[0].mxu0
        %v1523 = vpop.f32.mrb[0].mxu0
        %v1524 = vpop.f32.mrb[0].mxu0
        %1525 = vdwg.mxu0
        %v1527 = vsel %vm1290, %v1382, 0
        %v1530 = vsel %vm1390, %v916, 0
        %1532 = vmatprep.subr.bf16.mxu0 0
        %1533 = vmatpush1.bf16.msra.mxu0 %v1530
        %1534 = vmatprep.subr.bf16.mxu0 0
        %1535 = vmatpush1.bf16.msra.mxu0 0
        %1536 = vmatprep.subr.bf16.mxu0 0
        %1537 = vmatpush1.bf16.msra.mxu0 0
        %1538 = vmatprep.subr.bf16.mxu0 0
        %1539 = vmatpush1.bf16.msra.mxu0 0
        %1540 = vmatprep.subr.bf16.mxu0 0
        %1541 = vmatpush1.bf16.msra.mxu0 0
        %1542 = vmatprep.subr.bf16.mxu0 0
        %1543 = vmatpush1.bf16.msra.mxu0 0
        %1544 = vmatprep.subr.bf16.mxu0 0
        %1545 = vmatpush1.bf16.msra.mxu0 0
        %1546 = vmatprep.subr.bf16.mxu0 0
        %1547 = vmatpush1.bf16.msra.mxu0 0
        %1548 = vmatprep.subr.bf16.mxu0 0
        %1549 = vmatpush1.bf16.msra.mxu0 0
        %1550 = vmatprep.subr.bf16.mxu0 0
        %1551 = vmatpush1.bf16.msra.mxu0 0
        %1552 = vmatprep.subr.bf16.mxu0 0
        %1553 = vmatpush1.bf16.msra.mxu0 0
        %1554 = vmatprep.subr.bf16.mxu0 0
        %1555 = vmatpush1.bf16.msra.mxu0 0
        %1556 = vmatprep.subr.bf16.mxu0 0
        %1557 = vmatpush1.bf16.msra.mxu0 0
        %1558 = vmatprep.subr.bf16.mxu0 0
        %1559 = vmatpush1.bf16.msra.mxu0 0
        %1560 = vmatprep.subr.bf16.mxu0 0
        %1561 = vmatpush1.bf16.msra.mxu0 0
        %1562 = vmatprep.subr.bf16.mxu0 0
        %1563 = vmatpush1.bf16.msra.mxu0 0
        %1564 = vmatprep.mubr.bf16.mxu0 0
        %1565 = vmatmul.mubr.bf16.gmra.mrb[0].mxu0 %v1527
        %v1566 = vpop.f32.mrb[0].mxu0
        %v1567 = vadd.f32 0.0, %v1566
        %v1568 = vpop.f32.mrb[0].mxu0
        %v1569 = vpop.f32.mrb[0].mxu0
        %v1570 = vpop.f32.mrb[0].mxu0
        %1571 = vdwg.mxu0
        %v1573 = vsel %vm1290, %v1383, 0
        %v1576 = vsel %vm1390, %v917, 0
        %1578 = vmatprep.subr.bf16.mxu0 0
        %1579 = vmatpush1.bf16.msra.mxu0 %v1576
        %1580 = vmatprep.subr.bf16.mxu0 0
        %1581 = vmatpush1.bf16.msra.mxu0 0
        %1582 = vmatprep.subr.bf16.mxu0 0
        %1583 = vmatpush1.bf16.msra.mxu0 0
        %1584 = vmatprep.subr.bf16.mxu0 0
        %1585 = vmatpush1.bf16.msra.mxu0 0
        %1586 = vmatprep.subr.bf16.mxu0 0
        %1587 = vmatpush1.bf16.msra.mxu0 0
        %1588 = vmatprep.subr.bf16.mxu0 0
        %1589 = vmatpush1.bf16.msra.mxu0 0
        %1590 = vmatprep.subr.bf16.mxu0 0
        %1591 = vmatpush1.bf16.msra.mxu0 0
        %1592 = vmatprep.subr.bf16.mxu0 0
        %1593 = vmatpush1.bf16.msra.mxu0 0
        %1594 = vmatprep.subr.bf16.mxu0 0
        %1595 = vmatpush1.bf16.msra.mxu0 0
        %1596 = vmatprep.subr.bf16.mxu0 0
        %1597 = vmatpush1.bf16.msra.mxu0 0
        %1598 = vmatprep.subr.bf16.mxu0 0
        %1599 = vmatpush1.bf16.msra.mxu0 0
        %1600 = vmatprep.subr.bf16.mxu0 0
        %1601 = vmatpush1.bf16.msra.mxu0 0
        %1602 = vmatprep.subr.bf16.mxu0 0
        %1603 = vmatpush1.bf16.msra.mxu0 0
        %1604 = vmatprep.subr.bf16.mxu0 0
        %1605 = vmatpush1.bf16.msra.mxu0 0
        %1606 = vmatprep.subr.bf16.mxu0 0
        %1607 = vmatpush1.bf16.msra.mxu0 0
        %1608 = vmatprep.subr.bf16.mxu0 0
        %1609 = vmatpush1.bf16.msra.mxu0 0
        %1610 = vmatprep.mubr.bf16.mxu0 0
        %1611 = vmatmul.mubr.bf16.gmra.mrb[0].mxu0 %v1573
        %v1612 = vpop.f32.mrb[0].mxu0
        %v1613 = vadd.f32 0.0, %v1612
        %v1614 = vpop.f32.mrb[0].mxu0
        %v1615 = vpop.f32.mrb[0].mxu0
        %v1616 = vpop.f32.mrb[0].mxu0
        %1617 = vdwg.mxu0
        %v1619 = vsel %vm1290, %v1384, 0
        %v1622 = vsel %vm1390, %v918, 0
        %1624 = vmatprep.subr.bf16.mxu0 0
        %1625 = vmatpush1.bf16.msra.mxu0 %v1622
        %1626 = vmatprep.subr.bf16.mxu0 0
        %1627 = vmatpush1.bf16.msra.mxu0 0
        %1628 = vmatprep.subr.bf16.mxu0 0
        %1629 = vmatpush1.bf16.msra.mxu0 0
        %1630 = vmatprep.subr.bf16.mxu0 0
        %1631 = vmatpush1.bf16.msra.mxu0 0
        %1632 = vmatprep.subr.bf16.mxu0 0
        %1633 = vmatpush1.bf16.msra.mxu0 0
        %1634 = vmatprep.subr.bf16.mxu0 0
        %1635 = vmatpush1.bf16.msra.mxu0 0
        %1636 = vmatprep.subr.bf16.mxu0 0
        %1637 = vmatpush1.bf16.msra.mxu0 0
        %1638 = vmatprep.subr.bf16.mxu0 0
        %1639 = vmatpush1.bf16.msra.mxu0 0
        %1640 = vmatprep.subr.bf16.mxu0 0
        %1641 = vmatpush1.bf16.msra.mxu0 0
        %1642 = vmatprep.subr.bf16.mxu0 0
        %1643 = vmatpush1.bf16.msra.mxu0 0
        %1644 = vmatprep.subr.bf16.mxu0 0
        %1645 = vmatpush1.bf16.msra.mxu0 0
        %1646 = vmatprep.subr.bf16.mxu0 0
        %1647 = vmatpush1.bf16.msra.mxu0 0
        %1648 = vmatprep.subr.bf16.mxu0 0
        %1649 = vmatpush1.bf16.msra.mxu0 0
        %1650 = vmatprep.subr.bf16.mxu0 0
        %1651 = vmatpush1.bf16.msra.mxu0 0
        %1652 = vmatprep.subr.bf16.mxu0 0
        %1653 = vmatpush1.bf16.msra.mxu0 0
        %1654 = vmatprep.subr.bf16.mxu0 0
        %1655 = vmatpush1.bf16.msra.mxu0 0
        %1656 = vmatprep.mubr.bf16.mxu0 0
        %1657 = vmatmul.mubr.bf16.gmra.mrb[0].mxu0 %v1619
        %v1658 = vpop.f32.mrb[0].mxu0
        %v1659 = vadd.f32 0.0, %v1658
        %v1660 = vpop.f32.mrb[0].mxu0
        %v1661 = vpop.f32.mrb[0].mxu0
        %v1662 = vpop.f32.mrb[0].mxu0
        %1663 = vdwg.mxu0
        %v1665 = vsel %vm1290, %v1385, 0
        %v1668 = vsel %vm1390, %v919, 0
        %1670 = vmatprep.subr.bf16.mxu0 0
        %1671 = vmatpush1.bf16.msra.mxu0 %v1668
        %1672 = vmatprep.subr.bf16.mxu0 0
        %1673 = vmatpush1.bf16.msra.mxu0 0
        %1674 = vmatprep.subr.bf16.mxu0 0
        %1675 = vmatpush1.bf16.msra.mxu0 0
        %1676 = vmatprep.subr.bf16.mxu0 0
        %1677 = vmatpush1.bf16.msra.mxu0 0
        %1678 = vmatprep.subr.bf16.mxu0 0
        %1679 = vmatpush1.bf16.msra.mxu0 0
        %1680 = vmatprep.subr.bf16.mxu0 0
        %1681 = vmatpush1.bf16.msra.mxu0 0
        %1682 = vmatprep.subr.bf16.mxu0 0
        %1683 = vmatpush1.bf16.msra.mxu0 0
        %1684 = vmatprep.subr.bf16.mxu0 0
        %1685 = vmatpush1.bf16.msra.mxu0 0
        %1686 = vmatprep.subr.bf16.mxu0 0
        %1687 = vmatpush1.bf16.msra.mxu0 0
        %1688 = vmatprep.subr.bf16.mxu0 0
        %1689 = vmatpush1.bf16.msra.mxu0 0
        %1690 = vmatprep.subr.bf16.mxu0 0
        %1691 = vmatpush1.bf16.msra.mxu0 0
        %1692 = vmatprep.subr.bf16.mxu0 0
        %1693 = vmatpush1.bf16.msra.mxu0 0
        %1694 = vmatprep.subr.bf16.mxu0 0
        %1695 = vmatpush1.bf16.msra.mxu0 0
        %1696 = vmatprep.subr.bf16.mxu0 0
        %1697 = vmatpush1.bf16.msra.mxu0 0
        %1698 = vmatprep.subr.bf16.mxu0 0
        %1699 = vmatpush1.bf16.msra.mxu0 0
        %1700 = vmatprep.subr.bf16.mxu0 0
        %1701 = vmatpush1.bf16.msra.mxu0 0
        %1702 = vmatprep.mubr.bf16.mxu0 0
        %1703 = vmatmul.mubr.bf16.gmra.mrb[0].mxu0 %v1665
        %v1704 = vpop.f32.mrb[0].mxu0
        %v1705 = vadd.f32 0.0, %v1704
        %v1706 = vpop.f32.mrb[0].mxu0
        %v1707 = vpop.f32.mrb[0].mxu0
        %v1708 = vpop.f32.mrb[0].mxu0
        %1709 = vdwg.mxu0
        %v1711 = vsel %vm1290, %v1386, 0
        %v1714 = vsel %vm1390, %v920, 0
        %1716 = vmatprep.subr.bf16.mxu0 0
        %1717 = vmatpush1.bf16.msra.mxu0 %v1714
        %1718 = vmatprep.subr.bf16.mxu0 0
        %1719 = vmatpush1.bf16.msra.mxu0 0
        %1720 = vmatprep.subr.bf16.mxu0 0
        %1721 = vmatpush1.bf16.msra.mxu0 0
        %1722 = vmatprep.subr.bf16.mxu0 0
        %1723 = vmatpush1.bf16.msra.mxu0 0
        %1724 = vmatprep.subr.bf16.mxu0 0
        %1725 = vmatpush1.bf16.msra.mxu0 0
        %1726 = vmatprep.subr.bf16.mxu0 0
        %1727 = vmatpush1.bf16.msra.mxu0 0
        %1728 = vmatprep.subr.bf16.mxu0 0
        %1729 = vmatpush1.bf16.msra.mxu0 0
        %1730 = vmatprep.subr.bf16.mxu0 0
        %1731 = vmatpush1.bf16.msra.mxu0 0
        %1732 = vmatprep.subr.bf16.mxu0 0
        %1733 = vmatpush1.bf16.msra.mxu0 0
        %1734 = vmatprep.subr.bf16.mxu0 0
        %1735 = vmatpush1.bf16.msra.mxu0 0
        %1736 = vmatprep.subr.bf16.mxu0 0
        %1737 = vmatpush1.bf16.msra.mxu0 0
        %1738 = vmatprep.subr.bf16.mxu0 0
        %1739 = vmatpush1.bf16.msra.mxu0 0
        %1740 = vmatprep.subr.bf16.mxu0 0
        %1741 = vmatpush1.bf16.msra.mxu0 0
        %1742 = vmatprep.subr.bf16.mxu0 0
        %1743 = vmatpush1.bf16.msra.mxu0 0
        %1744 = vmatprep.subr.bf16.mxu0 0
        %1745 = vmatpush1.bf16.msra.mxu0 0
        %1746 = vmatprep.subr.bf16.mxu0 0
        %1747 = vmatpush1.bf16.msra.mxu0 0
        %1748 = vmatprep.mubr.bf16.mxu0 0
        %1749 = vmatmul.mubr.bf16.gmra.mrb[0].mxu0 %v1711
        %v1750 = vpop.f32.mrb[0].mxu0
        %v1751 = vadd.f32 0.0, %v1750
        %v1752 = vpop.f32.mrb[0].mxu0
        %v1753 = vpop.f32.mrb[0].mxu0
        %v1754 = vpop.f32.mrb[0].mxu0
        %1755 = vdwg.mxu0
        %1757 = vrot.lane.b32.xlu0 %v1475, 32
        %v1758 = vpop.permute.xlu0 %1757
        %1761 = vrot.lane.b32.xlu0 %v1521, 64
        %v1762 = vpop.permute.xlu0 %1761
        %1765 = vrot.lane.b32.xlu0 %v1567, 96
        %v1766 = vpop.permute.xlu0 %1765
        %1769 = vrot.lane.b32.xlu0 %v1659, 32
        %v1770 = vpop.permute.xlu0 %1769
        %1773 = vrot.lane.b32.xlu0 %v1705, 64
        %v1774 = vpop.permute.xlu0 %1773
        %1777 = vrot.lane.b32.xlu0 %v1751, 96
        %v1778 = vpop.permute.xlu0 %1777
        %v1780 = vsel %vm921, %v1429, %v1758
        %vm1781 = vcmask 523264
        %v1782 = vsel %vm1781, %v1780, %v1762
        %vm1783 = vcmask 785408
        %v1784 = vsel %vm1783, %v1782, %v1766
        %v1785 = vsel %vm921, %v1613, %v1770
        %v1786 = vsel %vm1781, %v1785, %v1774
        %v1787 = vsel %vm1783, %v1786, %v1778
        %v1788 = vpack.c.bf16 %v1784, %v1784
        %v1789 = vpack.c.bf16 %v1787, %v1787
        %v1790 = vld [vmem:[#allocation11] sm:$0xf]
        %v1791 = vld [vmem:[#allocation11 + $0x4] sm:$0xf]
        %v1792 = vld [vmem:[#allocation11 + $0x8] sm:$0xf]
        %v1793 = vld [vmem:[#allocation11 + $0xc] sm:$0xf]
        %v1794 = vld [vmem:[#allocation11 + $0x10] sm:$0xf]
        %v1795 = vld [vmem:[#allocation11 + $0x14] sm:$0xf]
        %v1796 = vld [vmem:[#allocation11 + $0x18] sm:$0xf]
        %v1797 = vld [vmem:[#allocation11 + $0x1c] sm:$0xf]
        %v1798 = vld [vmem:[#allocation11 + $0x20] sm:$0xf]
        %v1799 = vld [vmem:[#allocation11 + $0x24] sm:$0xf]
        %v1800 = vld [vmem:[#allocation11 + $0x28] sm:$0xf]
        %v1801 = vld [vmem:[#allocation11 + $0x2c] sm:$0xf]
        %v1802 = vld [vmem:[#allocation11 + $0x30] sm:$0xf]
        %v1803 = vld [vmem:[#allocation11 + $0x34] sm:$0xf]
        %v1804 = vld [vmem:[#allocation11 + $0x38] sm:$0xf]
        %v1805 = vld [vmem:[#allocation11 + $0x3c] sm:$0xf]
        %v1806 = vld [vmem:[#allocation11 + $0x40] sm:$0xf]
        %v1807 = vld [vmem:[#allocation11 + $0x44] sm:$0xf]
        %v1808 = vld [vmem:[#allocation11 + $0x48] sm:$0xf]
        %v1809 = vld [vmem:[#allocation11 + $0x4c] sm:$0xf]
        %v1810 = vld [vmem:[#allocation11 + $0x50] sm:$0xf]
        %v1811 = vld [vmem:[#allocation11 + $0x54] sm:$0xf]
        %v1812 = vld [vmem:[#allocation11 + $0x58] sm:$0xf]
        %v1813 = vld [vmem:[#allocation11 + $0x5c] sm:$0xf]
        %v1814 = vld [vmem:[#allocation11 + $0x60] sm:$0xf]
        %v1815 = vld [vmem:[#allocation11 + $0x64] sm:$0xf]
        %v1816 = vld [vmem:[#allocation11 + $0x68] sm:$0xf]
        %v1817 = vld [vmem:[#allocation11 + $0x6c] sm:$0xf]
        %v1818 = vld [vmem:[#allocation11 + $0x70] sm:$0xf]
        %v1819 = vld [vmem:[#allocation11 + $0x74] sm:$0xf]
        %v1820 = vld [vmem:[#allocation11 + $0x78] sm:$0xf]
        %v1821 = vld [vmem:[#allocation11 + $0x7c] sm:$0xf]
        %v1822 = vld [vmem:[%s5 + $0x6] sm:$0x1]
        %v1824 = vlaneseq
        %v1825 = vshrl.u32 %v1824, 7
        %v1826 = vsub.s32 0, %v1825
        %v1827 = vrot.slane %v1822, %v1826
        %v1861 = vunpack.c.l.b16 %v1790
        %v1862 = vunpack.c.l.b16 %v1791
        %v1863 = vunpack.c.l.b16 %v1792
        %v1864 = vunpack.c.l.b16 %v1793
        %v1865 = vunpack.c.l.b16 %v1794
        %v1866 = vunpack.c.l.b16 %v1795
        %v1867 = vunpack.c.l.b16 %v1796
        %v1868 = vunpack.c.l.b16 %v1797
        %v1869 = vunpack.c.l.b16 %v1798
        %v1870 = vunpack.c.l.b16 %v1799
        %v1871 = vunpack.c.l.b16 %v1800
        %v1872 = vunpack.c.l.b16 %v1801
        %v1873 = vunpack.c.l.b16 %v1802
        %v1874 = vunpack.c.l.b16 %v1803
        %v1875 = vunpack.c.l.b16 %v1804
        %v1876 = vunpack.c.l.b16 %v1805
        %v1877 = vunpack.c.l.b16 %v1806
        %v1878 = vunpack.c.l.b16 %v1807
        %v1879 = vunpack.c.l.b16 %v1808
        %v1880 = vunpack.c.l.b16 %v1809
        %v1881 = vunpack.c.l.b16 %v1810
        %v1882 = vunpack.c.l.b16 %v1811
        %v1883 = vunpack.c.l.b16 %v1812
        %v1884 = vunpack.c.l.b16 %v1813
        %v1885 = vunpack.c.l.b16 %v1814
        %v1886 = vunpack.c.l.b16 %v1815
        %v1887 = vunpack.c.l.b16 %v1816
        %v1888 = vunpack.c.l.b16 %v1817
        %v1889 = vunpack.c.l.b16 %v1818
        %v1890 = vunpack.c.l.b16 %v1819
        %v1891 = vunpack.c.l.b16 %v1820
        %v1892 = vunpack.c.l.b16 %v1821
        %v1893 = vpack.c.b16 %v1862, %v1861
        %v1894 = vpack.c.b16 %v1864, %v1863
        %v1895 = vpack.c.b16 %v1866, %v1865
        %v1896 = vpack.c.b16 %v1868, %v1867
        %v1897 = vpack.c.b16 %v1870, %v1869
        %v1898 = vpack.c.b16 %v1872, %v1871
        %v1899 = vpack.c.b16 %v1874, %v1873
        %v1900 = vpack.c.b16 %v1876, %v1875
        %v1901 = vpack.c.b16 %v1878, %v1877
        %v1902 = vpack.c.b16 %v1880, %v1879
        %v1903 = vpack.c.b16 %v1882, %v1881
        %v1904 = vpack.c.b16 %v1884, %v1883
        %v1905 = vpack.c.b16 %v1886, %v1885
        %v1906 = vpack.c.b16 %v1888, %v1887
        %v1907 = vpack.c.b16 %v1890, %v1889
        %v1908 = vpack.c.b16 %v1892, %v1891
        %1925 = vmatprep.subr.bf16.mxu0 0
        %1926 = vmatpush1.bf16.msra.mxu0 %v1893
        %1927 = vmatprep.subr.bf16.mxu0 0
        %1928 = vmatpush1.bf16.msra.mxu0 %v1894
        %1929 = vmatprep.subr.bf16.mxu0 0
        %1930 = vmatpush1.bf16.msra.mxu0 %v1895
        %1931 = vmatprep.subr.bf16.mxu0 0
        %1932 = vmatpush1.bf16.msra.mxu0 %v1896
        %1933 = vmatprep.subr.bf16.mxu0 0
        %1934 = vmatpush1.bf16.msra.mxu0 %v1897
        %1935 = vmatprep.subr.bf16.mxu0 0
        %1936 = vmatpush1.bf16.msra.mxu0 %v1898
        %1937 = vmatprep.subr.bf16.mxu0 0
        %1938 = vmatpush1.bf16.msra.mxu0 %v1899
        %1939 = vmatprep.subr.bf16.mxu0 0
        %1940 = vmatpush1.bf16.msra.mxu0 %v1900
        %1941 = vmatprep.subr.bf16.mxu0 0
        %1942 = vmatpush1.bf16.msra.mxu0 %v1901
        %1943 = vmatprep.subr.bf16.mxu0 0
        %1944 = vmatpush1.bf16.msra.mxu0 %v1902
        %1945 = vmatprep.subr.bf16.mxu0 0
        %1946 = vmatpush1.bf16.msra.mxu0 %v1903
        %1947 = vmatprep.subr.bf16.mxu0 0
        %1948 = vmatpush1.bf16.msra.mxu0 %v1904
        %1949 = vmatprep.subr.bf16.mxu0 0
        %1950 = vmatpush1.bf16.msra.mxu0 %v1905
        %1951 = vmatprep.subr.bf16.mxu0 0
        %1952 = vmatpush1.bf16.msra.mxu0 %v1906
        %1953 = vmatprep.subr.bf16.mxu0 0
        %1954 = vmatpush1.bf16.msra.mxu0 %v1907
        %1955 = vmatprep.subr.bf16.mxu0 0
        %1956 = vmatpush1.bf16.msra.mxu0 %v1908
        %1957 = vmatprep.mubr.bf16.mxu0 %v1789
        %1958 = vmatmul.mubr.bf16.gmra.mrb[0].mxu0 %v1788
        %v1959 = vpop.f32.mrb[0].mxu0
        %v1960 = vadd.f32 %v1827, %v1959
        %v1961 = vpop.f32.mrb[0].mxu0
        %v1962 = vpop.f32.mrb[0].mxu0
        %v1963 = vpop.f32.mrb[0].mxu0
        %1964 = vdwg.mxu0
        %v1965 = vadd.f32 %v1960, %v387
        %1966 = vadd.xlane.f32.xlu0 %v1965
        %v1967 = vpop.xlane.xlu0 %1966
        %v1968 = vrcp.pop 128.0
        %v1969 = vmul.f32 %v1967, %v1968
        %v1970 = vsub.f32 %v1965, %v1969
        %v1971 = vmul.f32 %v1970, %v1970
        %1972 = vadd.xlane.f32.xlu0 %v1971
        %v1973 = vpop.xlane.xlu0 %1972
        %v1974 = vrcp.pop 127.0
        %v1975 = vmul.f32 %v1973, %v1974
        %v1976 = vadd.f32 %v1975, 1e-08
        %v1977 = vrsqrt.pop %v1976
        %v1978 = vmul.f32 %v1970, %v1977
        %s1979 = sld [smem:[#allocation12]]
        %v1980 = vstv %s1979
        %v1981 = vmul.f32 %v1980, %v1978
        %s1982 = sld [smem:[#allocation12 + $0x1]]
        %v1983 = vstv %s1982
        %v1984 = vadd.f32 %v1981, %v1983
        %1985 = vst [vmem:[%s385] sm:$0xff] %v1984
        %s1986 = sand.u32 %s194, 1
        %s1987 = scalar_lea.sflag [#allocation4], %s1986
        %s1988 = sand.u32 %s194, 1
        %s1989 = smul.addr %s1988, 8
        %s1990 = scalar_lea.vmem [#allocation13], %s1989
        // Predicated region
        $region73: #{tpu_custom_call.1} parent=47 // pred_check
          %p1991 = pneg %p204
        $region74: #{tpu_custom_call.1} parent=47 // pred_check_branch
          %1993 = sbr.rel (%p1991) target = $region76
        $region75: #{tpu_custom_call.1} parent=47 // pred_region
          %s1995 = ssub.s32 128, 128
          %1996 = vsyncadd %s1987, %s1995
          %s1997 = smul.addr %s29, 128
          %s1998 = scalar_lea.hbm %s7, %s1997
          %s2000 = sshll.u32 %s1990, 4
          %s2001 = int_to_ptr.vmem [resolvable:$true] %s2000
          %2003 = dma.vmem_to_hbm [thread:$0]  %s2001, 128, %s1998, %s1987
        $region76: #{tpu_custom_call.1} parent=47 // pred_fallthru
          _
      $region48: #{tpu_custom_call.1} parent=5 // pred_fallthru
        _
      %p2004 = scmp.le.s32.totalorder 2, %s24
      // Predicated region
      $region77: #{tpu_custom_call.1} parent=5 // pred_check
        %p2005 = pneg %p2004
      $region78: #{tpu_custom_call.1} parent=5 // pred_check_branch
        %2007 = sbr.rel (%p2005) target = $region80
      $region79: #{tpu_custom_call.1} parent=5 // pred_region
        %s2008 = ssub.s32 %s24, 2
        // Predicated region
        $region81: #{tpu_custom_call.1} parent=79 // pred_check
          %p2009 = pneg %p210
        $region82: #{tpu_custom_call.1} parent=79 // pred_check_branch
          %2011 = sbr.rel (%p2009) target = $region84
        $region83: #{tpu_custom_call.1} parent=79 // pred_region
          %s2012 = sand.u32 %s195, 1
          %s2013 = scalar_lea.sflag [#allocation4], %s2012
          %s2014 = sand.u32 %s195, 1
          %s2015 = smul.addr %s2014, 8
          %s2016 = scalar_lea.vmem [#allocation13], %s2015
          %2017 = dma.done %s2013, 128
        $region84: #{tpu_custom_call.1} parent=79 // pred_fallthru
          _
      $region80: #{tpu_custom_call.1} parent=5 // pred_fallthru
        _
    $region6: #{tpu_custom_call.1} parent=1 // loop_footer
      %s28 = sadd.s32 1, %s24
    $region7: #{tpu_custom_call.1} parent=1 // loop_footer_branch
      %23 = sbr.rel target = $region3
    $region8: #{tpu_custom_call.1} parent=1 // loop_exit
      _
    %2018 = vsyncpa [#allocation3], 1
    %s2019 = scalar_lea.sflag [#allocation3], 1
    %2020 = vsyncpa %s2019, 1
    %2021 = vsyncpa [#allocation7], 1
    %s2022 = scalar_lea.sflag [#allocation7], 1
    %2023 = vsyncpa %s2022, 1
    %2024 = vsyncpa [#allocation10], 1
    %2025 = vsyncpa [#allocation4], 1
    %s2026 = scalar_lea.sflag [#allocation4], 1
    %2027 = vsyncpa %s2026, 1
    %2028 = vsyncpa [#allocation5], 1
    %s2029 = scalar_lea.sflag [#allocation5], 1
    %2030 = vsyncpa %s2029, 1

</llo_original>
